<compile_context>
chip_gen: v7x
topology: tpu7x:2x2x1
jax: 0.10.0
libtpu: 0.0.40
codegen_flags: <defaults>
</compile_context>

<pallas_src>
import math
import functools

import jax
import jax.numpy as jnp
from jax import lax
from jax.experimental import pallas as pl
from jax.experimental.pallas import tpu as pltpu

DEFAULT_ATTENTION_HEADS = 8
DEFAULT_ATTENTION_REG_WEIGHT = 0.0001
DEFAULT_DROPOUT = 0.45


def _agam_kernel(x_ref, wq_ref, bq_ref, wk_ref, bk_ref, wv_ref, bv_ref,
                 adj_ref, mask_ref, hsum_ref, wo_ref, bo_ref, out_ref,
                 *, batch, num_nodes, heads):
    """Single-invocation body (no grid): the whole problem lives in VMEM.

    x_ref    : (B*N, H)        batch-folded input
    wq/wk/wv : (H, H)          W*.T  (1/sqrt(head_dim) folded into wq / bq)
    bq/bk/bv : (1, H)
    adj_ref  : (heads*N, N)    learnable adjacency, pre-stacked along sublanes
    mask_ref : (heads*N, H)    mask[h*N+n, j] = 1 iff j // head_dim == h
    hsum_ref : (N, heads*N)    hsum[n, h*N+n'] = 1 iff n' == n  (head-sum matrix)
    wo_ref   : (H, H)          Wo.T
    bo_ref   : (1, H)
    out_ref  : (B*N, H)
    """
    N = num_nodes
    x = x_ref[...]

    # Batch-folded projections: three (B*N,H)@(H,H) MXU matmuls, no lane slicing of
    # a fused QKV value (weights stay as separate refs).
    q = jnp.dot(x, wq_ref[...], preferred_element_type=jnp.float32) + bq_ref[...]
    k = jnp.dot(x, wk_ref[...], preferred_element_type=jnp.float32) + bk_ref[...]
    v = jnp.dot(x, wv_ref[...], preferred_element_type=jnp.float32) + bv_ref[...]

    mask = mask_ref[...]                      # (heads*N, H)
    adj = adj_ref[...]                        # (heads*N, N)
    hsum = hsum_ref[...]                      # (N, heads*N)
    wo = wo_ref[...]
    bo = bo_ref[...]

    for b in range(batch):                    # static unroll; B is tiny
        lo = b * N                            # sublane-tile aligned (N % 8 == 0 here)
        qb = q[lo:lo + N, :]                  # (N, H)
        kb = k[lo:lo + N, :]
        vb = v[lo:lo + N, :]

        # Block-diagonal Q: rows (h, n) carry Q[n, :] masked to head-h feature columns,
        # so a single feature-axis contraction against K yields all per-head score
        # tiles already stacked along sublanes -> one softmax chain, no k.T transpose.
        qs = jnp.concatenate([qb] * heads, axis=0) * mask                  # (heads*N, H)
        scores = lax.dot_general(qs, kb, (((1,), (1,)), ((), ())),
                                 preferred_element_type=jnp.float32)       # (heads*N, N)
        scores = scores + adj                 # scale already folded into wq/bq

        # One numerically-stable softmax over the stacked scores (exact division).
        m = jnp.max(scores, axis=-1, keepdims=True)
        e = jnp.exp(scores - m)
        attn = e / jnp.sum(e, axis=-1, keepdims=True)                      # (heads*N, N)

        # attn @ V for all heads in one MXU push (superfluous columns masked next),
        # then head-select + head-concat as one mask multiply + one MXU matmul.
        o_full = jnp.dot(attn, vb, preferred_element_type=jnp.float32)     # (heads*N, H)
        out_cat = jnp.dot(hsum, o_full * mask,
                          preferred_element_type=jnp.float32)              # (N, H)

        out_b = jnp.dot(out_cat, wo, preferred_element_type=jnp.float32) + bo
        out_ref[lo:lo + N, :] = out_b.astype(out_ref.dtype)


def pack_params(params, *, heads):
    """Repack PyTorch-layout parameters ONCE (load time, outside the hot path).

    PyTorch Linear: y = x @ W.T + b with W of shape (out_features, in_features).
    """
    H = params["Wq"].shape[0]
    if H % heads:
        raise ValueError(f"hidden_dim={H} not divisible by heads={heads}")
    hd = H // heads
    N = params["adj"].shape[-1]
    scale = 1.0 / math.sqrt(hd)

    rows = jnp.arange(heads * N)
    # Column mask selecting head-h feature columns in the sublane-stacked layout.
    mask = (rows[:, None] // N == jnp.arange(H)[None, :] // hd).astype(jnp.float32)
    # Head-summation matrix: collapses the heads*N sublane stack back to N rows.
    hsum = (jnp.arange(N)[:, None] == rows[None, :] % N).astype(jnp.float32)

    return dict(
        wq=params["Wq"].T * scale,                       # 1/sqrt(head_dim) folded here
        bq=(params["bq"] * scale).reshape(1, H),
        wk=params["Wk"].T, bk=params["bk"].reshape(1, H),
        wv=params["Wv"].T, bv=params["bv"].reshape(1, H),
        adj=params["adj"].reshape(heads * N, N),         # pre-stacked along sublanes
        mask=mask,
        hsum=hsum,
        wo=params["Wo"].T,
        bo=params["bo"].reshape(1, H),
    )


@functools.partial(jax.jit, static_argnames=("heads", "attn_reg_weight"))
def adaptive_graph_attention(x, packed, *, heads, attn_reg_weight):
    """Pallas implementation of AdaptiveGraphAttentionModule.forward (eval mode).

    x: (B, N, H) float32; packed: output of pack_params().
    Returns (output (B, N, H), attn_reg_loss scalar).
    """
    B, N, H = x.shape
    if H % heads:
        raise ValueError(f"hidden_dim={H} not divisible by heads={heads}")

    x2 = x.reshape(B * N, H)
    kernel = functools.partial(_agam_kernel, batch=B, num_nodes=N, heads=heads)

    n_in = 12
    out2 = pl.pallas_call(
        kernel,
        out_shape=jax.ShapeDtypeStruct((B * N, H), jnp.float32),
        in_specs=[pl.BlockSpec(memory_space=pltpu.MemorySpace.VMEM)] * n_in,
        out_specs=pl.BlockSpec(memory_space=pltpu.MemorySpace.VMEM),
    )(x2, packed["wq"], packed["bq"], packed["wk"], packed["bk"],
      packed["wv"], packed["bv"], packed["adj"], packed["mask"],
      packed["hsum"], packed["wo"], packed["bo"])

    # Softmax rows are non-negative and sum to 1, so mean(|attn|) == 1/N exactly in
    # eval mode (identity dropout): the regularizer is a data-independent constant.
    attn_reg_loss = jnp.float32(attn_reg_weight / N)
    return out2.reshape(B, N, H), attn_reg_loss


def _reference(x, params, *, heads, attn_reg_weight):
    """Pure-JAX reference mirroring the PyTorch forward (eval-mode dropout)."""
    B, N, H = x.shape
    hd = H // heads
    q = (x @ params["Wq"].T + params["bq"]).reshape(B, N, heads, hd).transpose(0, 2, 1, 3)
    k = (x @ params["Wk"].T + params["bk"]).reshape(B, N, heads, hd).transpose(0, 2, 1, 3)
    v = (x @ params["Wv"].T + params["bv"]).reshape(B, N, heads, hd).transpose(0, 2, 1, 3)
    scores = jnp.einsum("bhnd,bhmd->bhnm", q, k) / math.sqrt(hd) + params["adj"]
    attn = jax.nn.softmax(scores, axis=-1)
    reg = attn_reg_weight * jnp.mean(jnp.abs(attn))
    out = jnp.einsum("bhnm,bhmd->bhnd", attn, v).transpose(0, 2, 1, 3).reshape(B, N, H)
    return out @ params["Wo"].T + params["bo"], reg


def make_params(key, hidden_dim, num_nodes, heads):
    ks = jax.random.split(key, 9)
    bound = 1.0 / math.sqrt(hidden_dim)          # PyTorch Linear default init bound
    def lin_w(k): return jax.random.uniform(k, (hidden_dim, hidden_dim),
                                            jnp.float32, -bound, bound)
    def lin_b(k): return jax.random.uniform(k, (hidden_dim,), jnp.float32, -bound, bound)
    # xavier_uniform for learnable_adj: gain=1, fan_in = fan_out = num_nodes
    a = math.sqrt(6.0 / (num_nodes + num_nodes))
    adj = jax.random.uniform(ks[8], (1, heads, num_nodes, num_nodes),
                             jnp.float32, -a, a)
    return dict(
        Wq=lin_w(ks[0]), bq=lin_b(ks[1]),
        Wk=lin_w(ks[2]), bk=lin_b(ks[3]),
        Wv=lin_w(ks[4]), bv=lin_b(ks[5]),
        Wo=lin_w(ks[6]), bo=lin_b(ks[7]),
        adj=adj,
    )


if __name__ == "__main__":
    B, N, H = 2, 16, 32
    heads = DEFAULT_ATTENTION_HEADS              # head_dim = 4

    key = jax.random.PRNGKey(0)
    kx, kp = jax.random.split(key)
    x = jax.random.normal(kx, (B, N, H), dtype=jnp.float32)
    params = make_params(kp, H, N, heads)
    packed = pack_params(params, heads=heads)    # one-time repack (load time)

    out, loss = adaptive_graph_attention(
        x, packed, heads=heads, attn_reg_weight=DEFAULT_ATTENTION_REG_WEIGHT)
    out = jax.block_until_ready(out)
    loss = jax.block_until_ready(loss)

    ref_out, ref_loss = _reference(
        x, params, heads=heads, attn_reg_weight=DEFAULT_ATTENTION_REG_WEIGHT)
    # Softmax uses exact division (no approximate reciprocal). Remaining tolerance
    # covers MXU default-precision operand rounding interacting with the load-time
    # 1/sqrt(head_dim) weight fold and the equivalent-but-reordered contractions.
    assert jnp.allclose(out, ref_out, atol=2e-3, rtol=2e-3), "output mismatch"
    assert jnp.allclose(loss, ref_loss, rtol=1e-3, atol=1e-8), "reg-loss mismatch"

    print("KERNEL_OK")
</pallas_src>

<mosaic_0001>
module attributes {stable_mosaic.version = 11 : i64} {
  func.func @_agam_kernel(%arg0: memref<32x32xf32, #tpu.memory_space<vmem>>, %arg1: memref<32x32xf32, #tpu.memory_space<vmem>>, %arg2: memref<1x32xf32, #tpu.memory_space<vmem>>, %arg3: memref<32x32xf32, #tpu.memory_space<vmem>>, %arg4: memref<1x32xf32, #tpu.memory_space<vmem>>, %arg5: memref<32x32xf32, #tpu.memory_space<vmem>>, %arg6: memref<1x32xf32, #tpu.memory_space<vmem>>, %arg7: memref<128x16xf32, #tpu.memory_space<vmem>>, %arg8: memref<128x32xf32, #tpu.memory_space<vmem>>, %arg9: memref<16x128xf32, #tpu.memory_space<vmem>>, %arg10: memref<32x32xf32, #tpu.memory_space<vmem>>, %arg11: memref<1x32xf32, #tpu.memory_space<vmem>>, %arg12: memref<32x32xf32, #tpu.memory_space<vmem>>) attributes {dimension_semantics = [], scalar_prefetch = 0 : i64, scratch_operands = 0 : i64, tpu.core_type = #tpu.core_type<tc>} {
    %c0 = arith.constant 0 : index
    %c0_0 = arith.constant 0 : index
    %0 = vector.load %arg0[%c0, %c0_0] : memref<32x32xf32, #tpu.memory_space<vmem>>, vector<32x32xf32>
    %c0_1 = arith.constant 0 : index
    %c0_2 = arith.constant 0 : index
    %1 = vector.load %arg1[%c0_1, %c0_2] : memref<32x32xf32, #tpu.memory_space<vmem>>, vector<32x32xf32>
    %cst = arith.constant dense<0.000000e+00> : vector<32x32xf32>
    %2 = tpu.matmul %0, %1, %cst {dimension_numbers = #tpu.dot_dimension_numbers<[1], [0], [0], [1], [0, 0, 1, 1], [], []>} : vector<32x32xf32>, vector<32x32xf32>, vector<32x32xf32> -> vector<32x32xf32>
    %c0_3 = arith.constant 0 : index
    %c0_4 = arith.constant 0 : index
    %3 = vector.load %arg2[%c0_3, %c0_4] : memref<1x32xf32, #tpu.memory_space<vmem>>, vector<1x32xf32>
    %4 = vector.broadcast %3 : vector<1x32xf32> to vector<32x32xf32>
    %5 = arith.addf %2, %4 : vector<32x32xf32>
    %c0_5 = arith.constant 0 : index
    %c0_6 = arith.constant 0 : index
    %6 = vector.load %arg3[%c0_5, %c0_6] : memref<32x32xf32, #tpu.memory_space<vmem>>, vector<32x32xf32>
    %cst_7 = arith.constant dense<0.000000e+00> : vector<32x32xf32>
    %7 = tpu.matmul %0, %6, %cst_7 {dimension_numbers = #tpu.dot_dimension_numbers<[1], [0], [0], [1], [0, 0, 1, 1], [], []>} : vector<32x32xf32>, vector<32x32xf32>, vector<32x32xf32> -> vector<32x32xf32>
    %c0_8 = arith.constant 0 : index
    %c0_9 = arith.constant 0 : index
    %8 = vector.load %arg4[%c0_8, %c0_9] : memref<1x32xf32, #tpu.memory_space<vmem>>, vector<1x32xf32>
    %9 = vector.broadcast %8 : vector<1x32xf32> to vector<32x32xf32>
    %10 = arith.addf %7, %9 : vector<32x32xf32>
    %c0_10 = arith.constant 0 : index
    %c0_11 = arith.constant 0 : index
    %11 = vector.load %arg5[%c0_10, %c0_11] : memref<32x32xf32, #tpu.memory_space<vmem>>, vector<32x32xf32>
    %cst_12 = arith.constant dense<0.000000e+00> : vector<32x32xf32>
    %12 = tpu.matmul %0, %11, %cst_12 {dimension_numbers = #tpu.dot_dimension_numbers<[1], [0], [0], [1], [0, 0, 1, 1], [], []>} : vector<32x32xf32>, vector<32x32xf32>, vector<32x32xf32> -> vector<32x32xf32>
    %c0_13 = arith.constant 0 : index
    %c0_14 = arith.constant 0 : index
    %13 = vector.load %arg6[%c0_13, %c0_14] : memref<1x32xf32, #tpu.memory_space<vmem>>, vector<1x32xf32>
    %14 = vector.broadcast %13 : vector<1x32xf32> to vector<32x32xf32>
    %15 = arith.addf %12, %14 : vector<32x32xf32>
    %c0_15 = arith.constant 0 : index
    %c0_16 = arith.constant 0 : index
    %16 = vector.load %arg8[%c0_15, %c0_16] : memref<128x32xf32, #tpu.memory_space<vmem>>, vector<128x32xf32>
    %c0_17 = arith.constant 0 : index
    %c0_18 = arith.constant 0 : index
    %17 = vector.load %arg7[%c0_17, %c0_18] : memref<128x16xf32, #tpu.memory_space<vmem>>, vector<128x16xf32>
    %c0_19 = arith.constant 0 : index
    %c0_20 = arith.constant 0 : index
    %18 = vector.load %arg9[%c0_19, %c0_20] : memref<16x128xf32, #tpu.memory_space<vmem>>, vector<16x128xf32>
    %c0_21 = arith.constant 0 : index
    %c0_22 = arith.constant 0 : index
    %19 = vector.load %arg10[%c0_21, %c0_22] : memref<32x32xf32, #tpu.memory_space<vmem>>, vector<32x32xf32>
    %c0_23 = arith.constant 0 : index
    %c0_24 = arith.constant 0 : index
    %20 = vector.load %arg11[%c0_23, %c0_24] : memref<1x32xf32, #tpu.memory_space<vmem>>, vector<1x32xf32>
    %21 = vector.extract_strided_slice %5 {offsets = [0, 0], sizes = [16, 32], strides = [1, 1]} : vector<32x32xf32> to vector<16x32xf32>
    %22 = vector.extract_strided_slice %10 {offsets = [0, 0], sizes = [16, 32], strides = [1, 1]} : vector<32x32xf32> to vector<16x32xf32>
    %23 = vector.extract_strided_slice %15 {offsets = [0, 0], sizes = [16, 32], strides = [1, 1]} : vector<32x32xf32> to vector<16x32xf32>
    %24 = tpu.concatenate %21, %21, %21, %21, %21, %21, %21, %21 in 0 : vector<16x32xf32>, vector<16x32xf32>, vector<16x32xf32>, vector<16x32xf32>, vector<16x32xf32>, vector<16x32xf32>, vector<16x32xf32>, vector<16x32xf32> -> vector<128x32xf32>
    %25 = arith.mulf %24, %16 : vector<128x32xf32>
    %cst_25 = arith.constant dense<0.000000e+00> : vector<128x16xf32>
    %26 = tpu.matmul %25, %22, %cst_25 {dimension_numbers = #tpu.dot_dimension_numbers<[1], [1], [0], [0], [0, 0, 1, 0], [], []>} : vector<128x32xf32>, vector<16x32xf32>, vector<128x16xf32> -> vector<128x16xf32>
    %27 = arith.addf %26, %17 : vector<128x16xf32>
    %cst_26 = arith.constant dense<0xFF800000> : vector<128xf32>
    %28 = vector.multi_reduction <maximumf>, %27, %cst_26 [1] : vector<128x16xf32> to vector<128xf32>
    %29 = vector.shape_cast %28 : vector<128xf32> to vector<128x1xf32>
    %30 = vector.broadcast %29 : vector<128x1xf32> to vector<128x16xf32>
    %31 = arith.subf %27, %30 : vector<128x16xf32>
    %32 = math.exp %31 : vector<128x16xf32>
    %cst_27 = arith.constant dense<0.000000e+00> : vector<128xf32>
    %33 = vector.multi_reduction <add>, %32, %cst_27 [1] : vector<128x16xf32> to vector<128xf32>
    %34 = vector.shape_cast %33 : vector<128xf32> to vector<128x1xf32>
    %35 = vector.broadcast %34 : vector<128x1xf32> to vector<128x16xf32>
    %36 = arith.divf %32, %35 : vector<128x16xf32>
    %cst_28 = arith.constant dense<0.000000e+00> : vector<128x32xf32>
    %37 = tpu.matmul %36, %23, %cst_28 {dimension_numbers = #tpu.dot_dimension_numbers<[1], [0], [0], [1], [0, 0, 1, 1], [], []>} : vector<128x16xf32>, vector<16x32xf32>, vector<128x32xf32> -> vector<128x32xf32>
    %38 = arith.mulf %37, %16 : vector<128x32xf32>
    %cst_29 = arith.constant dense<0.000000e+00> : vector<16x32xf32>
    %39 = tpu.matmul %18, %38, %cst_29 {dimension_numbers = #tpu.dot_dimension_numbers<[1], [0], [0], [1], [0, 0, 1, 1], [], []>} : vector<16x128xf32>, vector<128x32xf32>, vector<16x32xf32> -> vector<16x32xf32>
    %cst_30 = arith.constant dense<0.000000e+00> : vector<16x32xf32>
    %40 = tpu.matmul %39, %19, %cst_30 {dimension_numbers = #tpu.dot_dimension_numbers<[1], [0], [0], [1], [0, 0, 1, 1], [], []>} : vector<16x32xf32>, vector<32x32xf32>, vector<16x32xf32> -> vector<16x32xf32>
    %41 = vector.broadcast %20 : vector<1x32xf32> to vector<16x32xf32>
    %42 = arith.addf %40, %41 : vector<16x32xf32>
    %c0_31 = arith.constant 0 : index
    %c0_32 = arith.constant 0 : index
    %43 = vector.load %arg12[%c0_31, %c0_32] : memref<32x32xf32, #tpu.memory_space<vmem>>, vector<16x32xf32>
    tpu.vector_store %arg12[%c0_31, %c0_32], %42 {strides = array<i32>} : memref<32x32xf32, #tpu.memory_space<vmem>>, vector<16x32xf32>,
    %44 = vector.extract_strided_slice %5 {offsets = [16, 0], sizes = [16, 32], strides = [1, 1]} : vector<32x32xf32> to vector<16x32xf32>
    %45 = vector.extract_strided_slice %10 {offsets = [16, 0], sizes = [16, 32], strides = [1, 1]} : vector<32x32xf32> to vector<16x32xf32>
    %46 = vector.extract_strided_slice %15 {offsets = [16, 0], sizes = [16, 32], strides = [1, 1]} : vector<32x32xf32> to vector<16x32xf32>
    %47 = tpu.concatenate %44, %44, %44, %44, %44, %44, %44, %44 in 0 : vector<16x32xf32>, vector<16x32xf32>, vector<16x32xf32>, vector<16x32xf32>, vector<16x32xf32>, vector<16x32xf32>, vector<16x32xf32>, vector<16x32xf32> -> vector<128x32xf32>
    %48 = arith.mulf %47, %16 : vector<128x32xf32>
    %cst_33 = arith.constant dense<0.000000e+00> : vector<128x16xf32>
    %49 = tpu.matmul %48, %45, %cst_33 {dimension_numbers = #tpu.dot_dimension_numbers<[1], [1], [0], [0], [0, 0, 1, 0], [], []>} : vector<128x32xf32>, vector<16x32xf32>, vector<128x16xf32> -> vector<128x16xf32>
    %50 = arith.addf %49, %17 : vector<128x16xf32>
    %cst_34 = arith.constant dense<0xFF800000> : vector<128xf32>
    %51 = vector.multi_reduction <maximumf>, %50, %cst_34 [1] : vector<128x16xf32> to vector<128xf32>
    %52 = vector.shape_cast %51 : vector<128xf32> to vector<128x1xf32>
    %53 = vector.broadcast %52 : vector<128x1xf32> to vector<128x16xf32>
    %54 = arith.subf %50, %53 : vector<128x16xf32>
    %55 = math.exp %54 : vector<128x16xf32>
    %cst_35 = arith.constant dense<0.000000e+00> : vector<128xf32>
    %56 = vector.multi_reduction <add>, %55, %cst_35 [1] : vector<128x16xf32> to vector<128xf32>
    %57 = vector.shape_cast %56 : vector<128xf32> to vector<128x1xf32>
    %58 = vector.broadcast %57 : vector<128x1xf32> to vector<128x16xf32>
    %59 = arith.divf %55, %58 : vector<128x16xf32>
    %cst_36 = arith.constant dense<0.000000e+00> : vector<128x32xf32>
    %60 = tpu.matmul %59, %46, %cst_36 {dimension_numbers = #tpu.dot_dimension_numbers<[1], [0], [0], [1], [0, 0, 1, 1], [], []>} : vector<128x16xf32>, vector<16x32xf32>, vector<128x32xf32> -> vector<128x32xf32>
    %61 = arith.mulf %60, %16 : vector<128x32xf32>
    %cst_37 = arith.constant dense<0.000000e+00> : vector<16x32xf32>
    %62 = tpu.matmul %18, %61, %cst_37 {dimension_numbers = #tpu.dot_dimension_numbers<[1], [0], [0], [1], [0, 0, 1, 1], [], []>} : vector<16x128xf32>, vector<128x32xf32>, vector<16x32xf32> -> vector<16x32xf32>
    %cst_38 = arith.constant dense<0.000000e+00> : vector<16x32xf32>
    %63 = tpu.matmul %62, %19, %cst_38 {dimension_numbers = #tpu.dot_dimension_numbers<[1], [0], [0], [1], [0, 0, 1, 1], [], []>} : vector<16x32xf32>, vector<32x32xf32>, vector<16x32xf32> -> vector<16x32xf32>
    %64 = vector.broadcast %20 : vector<1x32xf32> to vector<16x32xf32>
    %65 = arith.addf %63, %64 : vector<16x32xf32>
    %c16 = arith.constant 16 : index
    %c0_39 = arith.constant 0 : index
    %66 = vector.load %arg12[%c16, %c0_39] : memref<32x32xf32, #tpu.memory_space<vmem>>, vector<16x32xf32>
    tpu.vector_store %arg12[%c16, %c0_39], %65 {strides = array<i32>} : memref<32x32xf32, #tpu.memory_space<vmem>>, vector<16x32xf32>,
    return
  }
}

</mosaic_0001>

<llo_original>
// kernel: adaptive_graph_attention.1
$region0: #{adaptive_graph_attention.1}
  #allocation0 [shape = 'u32[]', space=smem, size = 0x4, offset = 0x4, fixed_abs, tag = 'smem constant byte address 0x4 - core index']
  #allocation1 [shape = 'u32[144,128]{1,0:T(1,128)}', space=vmem, size = 0x12000, scoped, tag = 'internal scratch']
  %s0 = inlined_call_operand.vmem [shape: f32[32,32], index: 0, kind: input, shape index: {}]
  %s1 = inlined_call_operand.vmem [shape: f32[32,32], index: 1, kind: input, shape index: {}]
  %s2 = inlined_call_operand.vmem [shape: f32[1,32], index: 2, kind: input, shape index: {}]
  %s3 = inlined_call_operand.vmem [shape: f32[32,32], index: 3, kind: input, shape index: {}]
  %s4 = inlined_call_operand.vmem [shape: f32[1,32], index: 4, kind: input, shape index: {}]
  %s5 = inlined_call_operand.vmem [shape: f32[32,32], index: 5, kind: input, shape index: {}]
  %s6 = inlined_call_operand.vmem [shape: f32[1,32], index: 6, kind: input, shape index: {}]
  %s7 = inlined_call_operand.vmem [shape: f32[128,16], index: 7, kind: input, shape index: {}]
  %s8 = inlined_call_operand.vmem [shape: f32[128,32], index: 8, kind: input, shape index: {}]
  %s9 = inlined_call_operand.vmem [shape: f32[16,128], index: 9, kind: input, shape index: {}]
  %s10 = inlined_call_operand.vmem [shape: f32[32,32], index: 10, kind: input, shape index: {}]
  %s11 = inlined_call_operand.vmem [shape: f32[1,32], index: 11, kind: input, shape index: {}]
  %s12 = inlined_call_operand.hbm [shape: f32[32,32], index: 12, kind: output, shape index: {}]
  %s13 = sld [smem:[#allocation0]]
  $region58: #{adaptive_graph_attention.1} parent=0
    _
  %s15 = ssub.s32 1, %s13
  %s16 = scalar_select 0, %s15, %s13
  $region1: #{adaptive_graph_attention.1} parent=0
    #allocation2 [shape = 'u8[16384]{0}', space=vmem, size = 0x4000, scoped, tag = 'output window, operand 0, single buffered']
    #allocation3 [shape = 's32[1]{0}', space=sflag, size = 0x4, scoped, tag = 'scoped memory for adaptive_graph_attention.1']
    %17 = vsyncpa [#allocation3], 0
    // Predicated region
    $region2: #{adaptive_graph_attention.1} parent=1 // pred_check
      _
    $region3: #{adaptive_graph_attention.1} parent=1 // pred_check_branch
      %19 = sbr.rel (0) target = $region5
    $region4: #{adaptive_graph_attention.1} parent=1 // pred_region
      _
    $region5: #{adaptive_graph_attention.1} parent=1 // pred_fallthru
      _
    // Predicated region
    $region6: #{adaptive_graph_attention.1} parent=1 // pred_check
      _
    $region7: #{adaptive_graph_attention.1} parent=1 // pred_check_branch
      %21 = sbr.rel (0) target = $region9
    $region8: #{adaptive_graph_attention.1} parent=1 // pred_region
      _
    $region9: #{adaptive_graph_attention.1} parent=1 // pred_fallthru
      _
    // Predicated region
    $region10: #{adaptive_graph_attention.1} parent=1 // pred_check
      _
    $region11: #{adaptive_graph_attention.1} parent=1 // pred_check_branch
      %23 = sbr.rel (0) target = $region13
    $region12: #{adaptive_graph_attention.1} parent=1 // pred_region
      _
    $region13: #{adaptive_graph_attention.1} parent=1 // pred_fallthru
      _
    // Predicated region
    $region14: #{adaptive_graph_attention.1} parent=1 // pred_check
      _
    $region15: #{adaptive_graph_attention.1} parent=1 // pred_check_branch
      %25 = sbr.rel (0) target = $region17
    $region16: #{adaptive_graph_attention.1} parent=1 // pred_region
      _
    $region17: #{adaptive_graph_attention.1} parent=1 // pred_fallthru
      _
    // Predicated region
    $region18: #{adaptive_graph_attention.1} parent=1 // pred_check
      _
    $region19: #{adaptive_graph_attention.1} parent=1 // pred_check_branch
      %27 = sbr.rel (0) target = $region21
    $region20: #{adaptive_graph_attention.1} parent=1 // pred_region
      _
    $region21: #{adaptive_graph_attention.1} parent=1 // pred_fallthru
      _
    // Predicated region
    $region22: #{adaptive_graph_attention.1} parent=1 // pred_check
      _
    $region23: #{adaptive_graph_attention.1} parent=1 // pred_check_branch
      %29 = sbr.rel (0) target = $region25
    $region24: #{adaptive_graph_attention.1} parent=1 // pred_region
      _
    $region25: #{adaptive_graph_attention.1} parent=1 // pred_fallthru
      _
    // Predicated region
    $region26: #{adaptive_graph_attention.1} parent=1 // pred_check
      _
    $region27: #{adaptive_graph_attention.1} parent=1 // pred_check_branch
      %31 = sbr.rel (0) target = $region29
    $region28: #{adaptive_graph_attention.1} parent=1 // pred_region
      _
    $region29: #{adaptive_graph_attention.1} parent=1 // pred_fallthru
      _
    // Predicated region
    $region30: #{adaptive_graph_attention.1} parent=1 // pred_check
      _
    $region31: #{adaptive_graph_attention.1} parent=1 // pred_check_branch
      %33 = sbr.rel (0) target = $region33
    $region32: #{adaptive_graph_attention.1} parent=1 // pred_region
      _
    $region33: #{adaptive_graph_attention.1} parent=1 // pred_fallthru
      _
    // Predicated region
    $region34: #{adaptive_graph_attention.1} parent=1 // pred_check
      _
    $region35: #{adaptive_graph_attention.1} parent=1 // pred_check_branch
      %35 = sbr.rel (0) target = $region37
    $region36: #{adaptive_graph_attention.1} parent=1 // pred_region
      _
    $region37: #{adaptive_graph_attention.1} parent=1 // pred_fallthru
      _
    // Predicated region
    $region38: #{adaptive_graph_attention.1} parent=1 // pred_check
      _
    $region39: #{adaptive_graph_attention.1} parent=1 // pred_check_branch
      %37 = sbr.rel (0) target = $region41
    $region40: #{adaptive_graph_attention.1} parent=1 // pred_region
      _
    $region41: #{adaptive_graph_attention.1} parent=1 // pred_fallthru
      _
    // Predicated region
    $region42: #{adaptive_graph_attention.1} parent=1 // pred_check
      _
    $region43: #{adaptive_graph_attention.1} parent=1 // pred_check_branch
      %39 = sbr.rel (0) target = $region45
    $region44: #{adaptive_graph_attention.1} parent=1 // pred_region
      _
    $region45: #{adaptive_graph_attention.1} parent=1 // pred_fallthru
      _
    // Predicated region
    $region46: #{adaptive_graph_attention.1} parent=1 // pred_check
      _
    $region47: #{adaptive_graph_attention.1} parent=1 // pred_check_branch
      %41 = sbr.rel (0) target = $region49
    $region48: #{adaptive_graph_attention.1} parent=1 // pred_region
      _
    $region49: #{adaptive_graph_attention.1} parent=1 // pred_fallthru
      _
    %v42 = vld [vmem:[%s0] sm:$0xff]
    %v43 = vld [vmem:[%s0 + $0x8] sm:$0xff]
    %v44 = vld [vmem:[%s0 + $0x10] sm:$0xff]
    %v45 = vld [vmem:[%s0 + $0x18] sm:$0xff]
    %v46 = vld [vmem:[%s1] sm:$0xff]
    %v47 = vld [vmem:[%s1 + $0x8] sm:$0xff]
    %v48 = vld [vmem:[%s1 + $0x10] sm:$0xff]
    %v49 = vld [vmem:[%s1 + $0x18] sm:$0xff]
    %v50 = vld [vmem:[%s2] sm:$0x1]
    %v52 = vlaneseq
    %v53 = vshrl.u32 %v52, 7
    %v54 = vsub.s32 0, %v53
    %v55 = vrot.slane %v50, %v54
    %vm57 = vcmask 261120
    %v59 = vsel %vm57, %v42, 0
    %v62 = vsel %vm57, %v43, 0
    %v65 = vsel %vm57, %v44, 0
    %v68 = vsel %vm57, %v45, 0
    %70 = vmatprep.subr.mxu0 0.0
    %71 = vmatpush1.msra.mxu0 %v46
    %72 = vmatprep.subr.mxu0 0.0
    %73 = vmatpush1.msra.mxu0 %v47
    %74 = vmatprep.subr.mxu0 0.0
    %75 = vmatpush1.msra.mxu0 %v48
    %76 = vmatprep.subr.mxu0 0.0
    %77 = vmatpush1.msra.mxu0 %v49
    %78 = vmatprep.subr.mxu0 0.0
    %79 = vmatpush1.msra.mxu0 0.0
    %80 = vmatprep.subr.mxu0 0.0
    %81 = vmatpush1.msra.mxu0 0.0
    %82 = vmatprep.subr.mxu0 0.0
    %83 = vmatpush1.msra.mxu0 0.0
    %84 = vmatprep.subr.mxu0 0.0
    %85 = vmatpush1.msra.mxu0 0.0
    %86 = vmatprep.subr.mxu0 0.0
    %87 = vmatpush1.msra.mxu0 0.0
    %88 = vmatprep.subr.mxu0 0.0
    %89 = vmatpush1.msra.mxu0 0.0
    %90 = vmatprep.subr.mxu0 0.0
    %91 = vmatpush1.msra.mxu0 0.0
    %92 = vmatprep.subr.mxu0 0.0
    %93 = vmatpush1.msra.mxu0 0.0
    %94 = vmatprep.subr.mxu0 0.0
    %95 = vmatpush1.msra.mxu0 0.0
    %96 = vmatprep.subr.mxu0 0.0
    %97 = vmatpush1.msra.mxu0 0.0
    %98 = vmatprep.subr.mxu0 0.0
    %99 = vmatpush1.msra.mxu0 0.0
    %100 = vmatprep.subr.mxu0 0.0
    %101 = vmatpush1.msra.mxu0 0.0
    %102 = vmatprep.subr.mxu0 0.0
    %103 = vmatpush1.msra.mxu0 0.0
    %104 = vmatprep.subr.mxu0 0.0
    %105 = vmatpush1.msra.mxu0 0.0
    %106 = vmatprep.subr.mxu0 0.0
    %107 = vmatpush1.msra.mxu0 0.0
    %108 = vmatprep.subr.mxu0 0.0
    %109 = vmatpush1.msra.mxu0 0.0
    %110 = vmatprep.subr.mxu0 0.0
    %111 = vmatpush1.msra.mxu0 0.0
    %112 = vmatprep.subr.mxu0 0.0
    %113 = vmatpush1.msra.mxu0 0.0
    %114 = vmatprep.subr.mxu0 0.0
    %115 = vmatpush1.msra.mxu0 0.0
    %116 = vmatprep.subr.mxu0 0.0
    %117 = vmatpush1.msra.mxu0 0.0
    %118 = vmatprep.subr.mxu0 0.0
    %119 = vmatpush1.msra.mxu0 0.0
    %120 = vmatprep.subr.mxu0 0.0
    %121 = vmatpush1.msra.mxu0 0.0
    %122 = vmatprep.subr.mxu0 0.0
    %123 = vmatpush1.msra.mxu0 0.0
    %124 = vmatprep.subr.mxu0 0.0
    %125 = vmatpush1.msra.mxu0 0.0
    %126 = vmatprep.subr.mxu0 0.0
    %127 = vmatpush1.msra.mxu0 0.0
    %128 = vmatprep.subr.mxu0 0.0
    %129 = vmatpush1.msra.mxu0 0.0
    %130 = vmatprep.subr.mxu0 0.0
    %131 = vmatpush1.msra.mxu0 0.0
    %132 = vmatprep.subr.mxu0 0.0
    %133 = vmatpush1.msra.mxu0 0.0
    %134 = vmatprep.mubr.f32.mxu0 0.0
    %135 = vmatmul.mubr.f32.gmra.mrb[0].mxu0 %v59
    %v136 = vpop.f32.mrb[0].mxu0
    %v137 = vadd.f32 %v55, %v136
    %v138 = vpop.f32.mrb[0].mxu0
    %139 = vmatprep.mubr.f32.mxu0 0.0
    %140 = vmatmul.mubr.f32.gmra.mrb[0].mxu0 %v62
    %v141 = vpop.f32.mrb[0].mxu0
    %v142 = vadd.f32 %v55, %v141
    %v143 = vpop.f32.mrb[0].mxu0
    %144 = vmatprep.mubr.f32.mxu0 0.0
    %145 = vmatmul.mubr.f32.gmra.mrb[0].mxu0 %v65
    %v146 = vpop.f32.mrb[0].mxu0
    %v147 = vadd.f32 %v55, %v146
    %v148 = vpop.f32.mrb[0].mxu0
    %149 = vmatprep.mubr.f32.mxu0 0.0
    %150 = vmatmul.mubr.f32.gmra.mrb[0].mxu0 %v68
    %v151 = vpop.f32.mrb[0].mxu0
    %v152 = vadd.f32 %v55, %v151
    %v153 = vpop.f32.mrb[0].mxu0
    %154 = vdwg.mxu0
    %v155 = vld [vmem:[%s3] sm:$0xff]
    %v156 = vld [vmem:[%s3 + $0x8] sm:$0xff]
    %v157 = vld [vmem:[%s3 + $0x10] sm:$0xff]
    %v158 = vld [vmem:[%s3 + $0x18] sm:$0xff]
    %v159 = vld [vmem:[%s4] sm:$0x1]
    %v161 = vlaneseq
    %v162 = vshrl.u32 %v161, 7
    %v163 = vsub.s32 0, %v162
    %v164 = vrot.slane %v159, %v163
    %166 = vmatprep.subr.mxu0 0.0
    %167 = vmatpush1.msra.mxu0 %v155
    %168 = vmatprep.subr.mxu0 0.0
    %169 = vmatpush1.msra.mxu0 %v156
    %170 = vmatprep.subr.mxu0 0.0
    %171 = vmatpush1.msra.mxu0 %v157
    %172 = vmatprep.subr.mxu0 0.0
    %173 = vmatpush1.msra.mxu0 %v158
    %174 = vmatprep.subr.mxu0 0.0
    %175 = vmatpush1.msra.mxu0 0.0
    %176 = vmatprep.subr.mxu0 0.0
    %177 = vmatpush1.msra.mxu0 0.0
    %178 = vmatprep.subr.mxu0 0.0
    %179 = vmatpush1.msra.mxu0 0.0
    %180 = vmatprep.subr.mxu0 0.0
    %181 = vmatpush1.msra.mxu0 0.0
    %182 = vmatprep.subr.mxu0 0.0
    %183 = vmatpush1.msra.mxu0 0.0
    %184 = vmatprep.subr.mxu0 0.0
    %185 = vmatpush1.msra.mxu0 0.0
    %186 = vmatprep.subr.mxu0 0.0
    %187 = vmatpush1.msra.mxu0 0.0
    %188 = vmatprep.subr.mxu0 0.0
    %189 = vmatpush1.msra.mxu0 0.0
    %190 = vmatprep.subr.mxu0 0.0
    %191 = vmatpush1.msra.mxu0 0.0
    %192 = vmatprep.subr.mxu0 0.0
    %193 = vmatpush1.msra.mxu0 0.0
    %194 = vmatprep.subr.mxu0 0.0
    %195 = vmatpush1.msra.mxu0 0.0
    %196 = vmatprep.subr.mxu0 0.0
    %197 = vmatpush1.msra.mxu0 0.0
    %198 = vmatprep.subr.mxu0 0.0
    %199 = vmatpush1.msra.mxu0 0.0
    %200 = vmatprep.subr.mxu0 0.0
    %201 = vmatpush1.msra.mxu0 0.0
    %202 = vmatprep.subr.mxu0 0.0
    %203 = vmatpush1.msra.mxu0 0.0
    %204 = vmatprep.subr.mxu0 0.0
    %205 = vmatpush1.msra.mxu0 0.0
    %206 = vmatprep.subr.mxu0 0.0
    %207 = vmatpush1.msra.mxu0 0.0
    %208 = vmatprep.subr.mxu0 0.0
    %209 = vmatpush1.msra.mxu0 0.0
    %210 = vmatprep.subr.mxu0 0.0
    %211 = vmatpush1.msra.mxu0 0.0
    %212 = vmatprep.subr.mxu0 0.0
    %213 = vmatpush1.msra.mxu0 0.0
    %214 = vmatprep.subr.mxu0 0.0
    %215 = vmatpush1.msra.mxu0 0.0
    %216 = vmatprep.subr.mxu0 0.0
    %217 = vmatpush1.msra.mxu0 0.0
    %218 = vmatprep.subr.mxu0 0.0
    %219 = vmatpush1.msra.mxu0 0.0
    %220 = vmatprep.subr.mxu0 0.0
    %221 = vmatpush1.msra.mxu0 0.0
    %222 = vmatprep.subr.mxu0 0.0
    %223 = vmatpush1.msra.mxu0 0.0
    %224 = vmatprep.subr.mxu0 0.0
    %225 = vmatpush1.msra.mxu0 0.0
    %226 = vmatprep.subr.mxu0 0.0
    %227 = vmatpush1.msra.mxu0 0.0
    %228 = vmatprep.subr.mxu0 0.0
    %229 = vmatpush1.msra.mxu0 0.0
    %230 = vmatprep.mubr.f32.mxu0 0.0
    %231 = vmatmul.mubr.f32.gmra.mrb[0].mxu0 %v59
    %v232 = vpop.f32.mrb[0].mxu0
    %v233 = vadd.f32 %v164, %v232
    %v234 = vpop.f32.mrb[0].mxu0
    %235 = vmatprep.mubr.f32.mxu0 0.0
    %236 = vmatmul.mubr.f32.gmra.mrb[0].mxu0 %v62
    %v237 = vpop.f32.mrb[0].mxu0
    %v238 = vadd.f32 %v164, %v237
    %v239 = vpop.f32.mrb[0].mxu0
    %240 = vmatprep.mubr.f32.mxu0 0.0
    %241 = vmatmul.mubr.f32.gmra.mrb[0].mxu0 %v65
    %v242 = vpop.f32.mrb[0].mxu0
    %v243 = vadd.f32 %v164, %v242
    %v244 = vpop.f32.mrb[0].mxu0
    %245 = vmatprep.mubr.f32.mxu0 0.0
    %246 = vmatmul.mubr.f32.gmra.mrb[0].mxu0 %v68
    %v247 = vpop.f32.mrb[0].mxu0
    %v248 = vadd.f32 %v164, %v247
    %v249 = vpop.f32.mrb[0].mxu0
    %250 = vdwg.mxu0
    %v251 = vld [vmem:[%s5] sm:$0xff]
    %v252 = vld [vmem:[%s5 + $0x8] sm:$0xff]
    %v253 = vld [vmem:[%s5 + $0x10] sm:$0xff]
    %v254 = vld [vmem:[%s5 + $0x18] sm:$0xff]
    %v255 = vld [vmem:[%s6] sm:$0x1]
    %v257 = vlaneseq
    %v258 = vshrl.u32 %v257, 7
    %v259 = vsub.s32 0, %v258
    %v260 = vrot.slane %v255, %v259
    %262 = vmatprep.subr.mxu0 0.0
    %263 = vmatpush1.msra.mxu0 %v251
    %264 = vmatprep.subr.mxu0 0.0
    %265 = vmatpush1.msra.mxu0 %v252
    %266 = vmatprep.subr.mxu0 0.0
    %267 = vmatpush1.msra.mxu0 %v253
    %268 = vmatprep.subr.mxu0 0.0
    %269 = vmatpush1.msra.mxu0 %v254
    %270 = vmatprep.subr.mxu0 0.0
    %271 = vmatpush1.msra.mxu0 0.0
    %272 = vmatprep.subr.mxu0 0.0
    %273 = vmatpush1.msra.mxu0 0.0
    %274 = vmatprep.subr.mxu0 0.0
    %275 = vmatpush1.msra.mxu0 0.0
    %276 = vmatprep.subr.mxu0 0.0
    %277 = vmatpush1.msra.mxu0 0.0
    %278 = vmatprep.subr.mxu0 0.0
    %279 = vmatpush1.msra.mxu0 0.0
    %280 = vmatprep.subr.mxu0 0.0
    %281 = vmatpush1.msra.mxu0 0.0
    %282 = vmatprep.subr.mxu0 0.0
    %283 = vmatpush1.msra.mxu0 0.0
    %284 = vmatprep.subr.mxu0 0.0
    %285 = vmatpush1.msra.mxu0 0.0
    %286 = vmatprep.subr.mxu0 0.0
    %287 = vmatpush1.msra.mxu0 0.0
    %288 = vmatprep.subr.mxu0 0.0
    %289 = vmatpush1.msra.mxu0 0.0
    %290 = vmatprep.subr.mxu0 0.0
    %291 = vmatpush1.msra.mxu0 0.0
    %292 = vmatprep.subr.mxu0 0.0
    %293 = vmatpush1.msra.mxu0 0.0
    %294 = vmatprep.subr.mxu0 0.0
    %295 = vmatpush1.msra.mxu0 0.0
    %296 = vmatprep.subr.mxu0 0.0
    %297 = vmatpush1.msra.mxu0 0.0
    %298 = vmatprep.subr.mxu0 0.0
    %299 = vmatpush1.msra.mxu0 0.0
    %300 = vmatprep.subr.mxu0 0.0
    %301 = vmatpush1.msra.mxu0 0.0
    %302 = vmatprep.subr.mxu0 0.0
    %303 = vmatpush1.msra.mxu0 0.0
    %304 = vmatprep.subr.mxu0 0.0
    %305 = vmatpush1.msra.mxu0 0.0
    %306 = vmatprep.subr.mxu0 0.0
    %307 = vmatpush1.msra.mxu0 0.0
    %308 = vmatprep.subr.mxu0 0.0
    %309 = vmatpush1.msra.mxu0 0.0
    %310 = vmatprep.subr.mxu0 0.0
    %311 = vmatpush1.msra.mxu0 0.0
    %312 = vmatprep.subr.mxu0 0.0
    %313 = vmatpush1.msra.mxu0 0.0
    %314 = vmatprep.subr.mxu0 0.0
    %315 = vmatpush1.msra.mxu0 0.0
    %316 = vmatprep.subr.mxu0 0.0
    %317 = vmatpush1.msra.mxu0 0.0
    %318 = vmatprep.subr.mxu0 0.0
    %319 = vmatpush1.msra.mxu0 0.0
    %320 = vmatprep.subr.mxu0 0.0
    %321 = vmatpush1.msra.mxu0 0.0
    %322 = vmatprep.subr.mxu0 0.0
    %323 = vmatpush1.msra.mxu0 0.0
    %324 = vmatprep.subr.mxu0 0.0
    %325 = vmatpush1.msra.mxu0 0.0
    %326 = vmatprep.mubr.f32.mxu0 0.0
    %327 = vmatmul.mubr.f32.gmra.mrb[0].mxu0 %v59
    %v328 = vpop.f32.mrb[0].mxu0
    %v329 = vadd.f32 %v260, %v328
    %v330 = vpop.f32.mrb[0].mxu0
    %331 = vmatprep.mubr.f32.mxu0 0.0
    %332 = vmatmul.mubr.f32.gmra.mrb[0].mxu0 %v62
    %v333 = vpop.f32.mrb[0].mxu0
    %v334 = vadd.f32 %v260, %v333
    %v335 = vpop.f32.mrb[0].mxu0
    %336 = vmatprep.mubr.f32.mxu0 0.0
    %337 = vmatmul.mubr.f32.gmra.mrb[0].mxu0 %v65
    %v338 = vpop.f32.mrb[0].mxu0
    %v339 = vadd.f32 %v260, %v338
    %v340 = vpop.f32.mrb[0].mxu0
    %341 = vmatprep.mubr.f32.mxu0 0.0
    %342 = vmatmul.mubr.f32.gmra.mrb[0].mxu0 %v68
    %v343 = vpop.f32.mrb[0].mxu0
    %v344 = vadd.f32 %v260, %v343
    %v345 = vpop.f32.mrb[0].mxu0
    %346 = vdwg.mxu0
    %v347 = vld [vmem:[%s8] sm:$0xff]
    %v348 = vld [vmem:[%s8 + $0x8] sm:$0xff]
    %v349 = vld [vmem:[%s8 + $0x10] sm:$0xff]
    %v350 = vld [vmem:[%s8 + $0x18] sm:$0xff]
    %v351 = vld [vmem:[%s8 + $0x20] sm:$0xff]
    %v352 = vld [vmem:[%s8 + $0x28] sm:$0xff]
    %v353 = vld [vmem:[%s8 + $0x30] sm:$0xff]
    %v354 = vld [vmem:[%s8 + $0x38] sm:$0xff]
    %v355 = vld [vmem:[%s8 + $0x40] sm:$0xff]
    %v356 = vld [vmem:[%s8 + $0x48] sm:$0xff]
    %v357 = vld [vmem:[%s8 + $0x50] sm:$0xff]
    %v358 = vld [vmem:[%s8 + $0x58] sm:$0xff]
    %v359 = vld [vmem:[%s8 + $0x60] sm:$0xff]
    %v360 = vld [vmem:[%s8 + $0x68] sm:$0xff]
    %v361 = vld [vmem:[%s8 + $0x70] sm:$0xff]
    %v362 = vld [vmem:[%s8 + $0x78] sm:$0xff]
    %v363 = vld [vmem:[%s7] sm:$0xff]
    %v364 = vld [vmem:[%s7 + $0x8] sm:$0xff]
    %v365 = vld [vmem:[%s7 + $0x10] sm:$0xff]
    %v366 = vld [vmem:[%s7 + $0x18] sm:$0xff]
    %v367 = vld [vmem:[%s7 + $0x20] sm:$0xff]
    %v368 = vld [vmem:[%s7 + $0x28] sm:$0xff]
    %v369 = vld [vmem:[%s7 + $0x30] sm:$0xff]
    %v370 = vld [vmem:[%s7 + $0x38] sm:$0xff]
    %v371 = vld [vmem:[%s7 + $0x40] sm:$0xff]
    %v372 = vld [vmem:[%s7 + $0x48] sm:$0xff]
    %v373 = vld [vmem:[%s7 + $0x50] sm:$0xff]
    %v374 = vld [vmem:[%s7 + $0x58] sm:$0xff]
    %v375 = vld [vmem:[%s7 + $0x60] sm:$0xff]
    %v376 = vld [vmem:[%s7 + $0x68] sm:$0xff]
    %v377 = vld [vmem:[%s7 + $0x70] sm:$0xff]
    %v378 = vld [vmem:[%s7 + $0x78] sm:$0xff]
    %v379 = vld [vmem:[%s9] sm:$0xff]
    %v380 = vld [vmem:[%s9 + $0x8] sm:$0xff]
    %v381 = vld [vmem:[%s10] sm:$0xff]
    %v382 = vld [vmem:[%s10 + $0x8] sm:$0xff]
    %v383 = vld [vmem:[%s10 + $0x10] sm:$0xff]
    %v384 = vld [vmem:[%s10 + $0x18] sm:$0xff]
    %v385 = vld [vmem:[%s11] sm:$0x1]
    %v386 = vmul.f32 %v137, %v347
    %v387 = vmul.f32 %v142, %v348
    %v388 = vmul.f32 %v137, %v349
    %v389 = vmul.f32 %v142, %v350
    %v390 = vmul.f32 %v137, %v351
    %v391 = vmul.f32 %v142, %v352
    %v392 = vmul.f32 %v137, %v353
    %v393 = vmul.f32 %v142, %v354
    %v394 = vmul.f32 %v137, %v355
    %v395 = vmul.f32 %v142, %v356
    %v396 = vmul.f32 %v137, %v357
    %v397 = vmul.f32 %v142, %v358
    %v398 = vmul.f32 %v137, %v359
    %v399 = vmul.f32 %v142, %v360
    %v400 = vmul.f32 %v137, %v361
    %v401 = vmul.f32 %v142, %v362
    %v403 = vsel %vm57, %v386, 0
    %v406 = vsel %vm57, %v387, 0
    %v409 = vsel %vm57, %v388, 0
    %v412 = vsel %vm57, %v389, 0
    %v415 = vsel %vm57, %v390, 0
    %v418 = vsel %vm57, %v391, 0
    %v421 = vsel %vm57, %v392, 0
    %v424 = vsel %vm57, %v393, 0
    %v427 = vsel %vm57, %v394, 0
    %v430 = vsel %vm57, %v395, 0
    %v433 = vsel %vm57, %v396, 0
    %v436 = vsel %vm57, %v397, 0
    %v439 = vsel %vm57, %v398, 0
    %v442 = vsel %vm57, %v399, 0
    %v445 = vsel %vm57, %v400, 0
    %v448 = vsel %vm57, %v401, 0
    %v451 = vsel %vm57, %v233, 0
    %v454 = vsel %vm57, %v238, 0
    %456 = vmatprep.subr.mxu0 0.0
    %457 = vmatpush1.xpose.msra.mxu0 %v451
    %458 = vmatprep.subr.mxu0 0.0
    %459 = vmatpush1.xpose.msra.mxu0 %v454
    %460 = vmatprep.subr.mxu0 0.0
    %461 = vmatpush1.xpose.msra.mxu0 0.0
    %462 = vmatprep.subr.mxu0 0.0
    %463 = vmatpush1.xpose.msra.mxu0 0.0
    %464 = vmatprep.subr.mxu0 0.0
    %465 = vmatpush1.xpose.msra.mxu0 0.0
    %466 = vmatprep.subr.mxu0 0.0
    %467 = vmatpush1.xpose.msra.mxu0 0.0
    %468 = vmatprep.subr.mxu0 0.0
    %469 = vmatpush1.xpose.msra.mxu0 0.0
    %470 = vmatprep.subr.mxu0 0.0
    %471 = vmatpush1.xpose.msra.mxu0 0.0
    %472 = vmatprep.subr.mxu0 0.0
    %473 = vmatpush1.xpose.msra.mxu0 0.0
    %474 = vmatprep.subr.mxu0 0.0
    %475 = vmatpush1.xpose.msra.mxu0 0.0
    %476 = vmatprep.subr.mxu0 0.0
    %477 = vmatpush1.xpose.msra.mxu0 0.0
    %478 = vmatprep.subr.mxu0 0.0
    %479 = vmatpush1.xpose.msra.mxu0 0.0
    %480 = vmatprep.subr.mxu0 0.0
    %481 = vmatpush1.xpose.msra.mxu0 0.0
    %482 = vmatprep.subr.mxu0 0.0
    %483 = vmatpush1.xpose.msra.mxu0 0.0
    %484 = vmatprep.subr.mxu0 0.0
    %485 = vmatpush1.xpose.msra.mxu0 0.0
    %486 = vmatprep.subr.mxu0 0.0
    %487 = vmatpush1.xpose.msra.mxu0 0.0
    %488 = vmatprep.subr.mxu0 0.0
    %489 = vmatpush1.xpose.msra.mxu0 0.0
    %490 = vmatprep.subr.mxu0 0.0
    %491 = vmatpush1.xpose.msra.mxu0 0.0
    %492 = vmatprep.subr.mxu0 0.0
    %493 = vmatpush1.xpose.msra.mxu0 0.0
    %494 = vmatprep.subr.mxu0 0.0
    %495 = vmatpush1.xpose.msra.mxu0 0.0
    %496 = vmatprep.subr.mxu0 0.0
    %497 = vmatpush1.xpose.msra.mxu0 0.0
    %498 = vmatprep.subr.mxu0 0.0
    %499 = vmatpush1.xpose.msra.mxu0 0.0
    %500 = vmatprep.subr.mxu0 0.0
    %501 = vmatpush1.xpose.msra.mxu0 0.0
    %502 = vmatprep.subr.mxu0 0.0
    %503 = vmatpush1.xpose.msra.mxu0 0.0
    %504 = vmatprep.subr.mxu0 0.0
    %505 = vmatpush1.xpose.msra.mxu0 0.0
    %506 = vmatprep.subr.mxu0 0.0
    %507 = vmatpush1.xpose.msra.mxu0 0.0
    %508 = vmatprep.subr.mxu0 0.0
    %509 = vmatpush1.xpose.msra.mxu0 0.0
    %510 = vmatprep.subr.mxu0 0.0
    %511 = vmatpush1.xpose.msra.mxu0 0.0
    %512 = vmatprep.subr.mxu0 0.0
    %513 = vmatpush1.xpose.msra.mxu0 0.0
    %514 = vmatprep.subr.mxu0 0.0
    %515 = vmatpush1.xpose.msra.mxu0 0.0
    %516 = vmatprep.subr.mxu0 0.0
    %517 = vmatpush1.xpose.msra.mxu0 0.0
    %518 = vmatprep.subr.mxu0 0.0
    %519 = vmatpush1.xpose.msra.mxu0 0.0
    %520 = vmatprep.mubr.f32.mxu0 0.0
    %521 = vmatmul.mubr.f32.gmra.mrb[0].mxu0 %v403
    %v522 = vpop.f32.mrb[0].mxu0
    %v523 = vadd.f32 %v363, %v522
    %v524 = vpop.f32.mrb[0].mxu0
    %525 = vmatprep.mubr.f32.mxu0 0.0
    %526 = vmatmul.mubr.f32.gmra.mrb[0].mxu0 %v406
    %v527 = vpop.f32.mrb[0].mxu0
    %v528 = vadd.f32 %v364, %v527
    %v529 = vpop.f32.mrb[0].mxu0
    %530 = vmatprep.mubr.f32.mxu0 0.0
    %531 = vmatmul.mubr.f32.gmra.mrb[0].mxu0 %v409
    %v532 = vpop.f32.mrb[0].mxu0
    %v533 = vadd.f32 %v365, %v532
    %v534 = vpop.f32.mrb[0].mxu0
    %535 = vmatprep.mubr.f32.mxu0 0.0
    %536 = vmatmul.mubr.f32.gmra.mrb[0].mxu0 %v412
    %v537 = vpop.f32.mrb[0].mxu0
    %v538 = vadd.f32 %v366, %v537
    %v539 = vpop.f32.mrb[0].mxu0
    %540 = vmatprep.mubr.f32.mxu0 0.0
    %541 = vmatmul.mubr.f32.gmra.mrb[0].mxu0 %v415
    %v542 = vpop.f32.mrb[0].mxu0
    %v543 = vadd.f32 %v367, %v542
    %v544 = vpop.f32.mrb[0].mxu0
    %545 = vmatprep.mubr.f32.mxu0 0.0
    %546 = vmatmul.mubr.f32.gmra.mrb[0].mxu0 %v418
    %v547 = vpop.f32.mrb[0].mxu0
    %v548 = vadd.f32 %v368, %v547
    %v549 = vpop.f32.mrb[0].mxu0
    %550 = vmatprep.mubr.f32.mxu0 0.0
    %551 = vmatmul.mubr.f32.gmra.mrb[0].mxu0 %v421
    %v552 = vpop.f32.mrb[0].mxu0
    %v553 = vadd.f32 %v369, %v552
    %v554 = vpop.f32.mrb[0].mxu0
    %555 = vmatprep.mubr.f32.mxu0 0.0
    %556 = vmatmul.mubr.f32.gmra.mrb[0].mxu0 %v424
    %v557 = vpop.f32.mrb[0].mxu0
    %v558 = vadd.f32 %v370, %v557
    %v559 = vpop.f32.mrb[0].mxu0
    %560 = vmatprep.mubr.f32.mxu0 0.0
    %561 = vmatmul.mubr.f32.gmra.mrb[0].mxu0 %v427
    %v562 = vpop.f32.mrb[0].mxu0
    %v563 = vadd.f32 %v371, %v562
    %v564 = vpop.f32.mrb[0].mxu0
    %565 = vmatprep.mubr.f32.mxu0 0.0
    %566 = vmatmul.mubr.f32.gmra.mrb[0].mxu0 %v430
    %v567 = vpop.f32.mrb[0].mxu0
    %v568 = vadd.f32 %v372, %v567
    %v569 = vpop.f32.mrb[0].mxu0
    %570 = vmatprep.mubr.f32.mxu0 0.0
    %571 = vmatmul.mubr.f32.gmra.mrb[0].mxu0 %v433
    %v572 = vpop.f32.mrb[0].mxu0
    %v573 = vadd.f32 %v373, %v572
    %v574 = vpop.f32.mrb[0].mxu0
    %575 = vmatprep.mubr.f32.mxu0 0.0
    %576 = vmatmul.mubr.f32.gmra.mrb[0].mxu0 %v436
    %v577 = vpop.f32.mrb[0].mxu0
    %v578 = vadd.f32 %v374, %v577
    %v579 = vpop.f32.mrb[0].mxu0
    %580 = vmatprep.mubr.f32.mxu0 0.0
    %581 = vmatmul.mubr.f32.gmra.mrb[0].mxu0 %v439
    %v582 = vpop.f32.mrb[0].mxu0
    %v583 = vadd.f32 %v375, %v582
    %v584 = vpop.f32.mrb[0].mxu0
    %585 = vmatprep.mubr.f32.mxu0 0.0
    %586 = vmatmul.mubr.f32.gmra.mrb[0].mxu0 %v442
    %v587 = vpop.f32.mrb[0].mxu0
    %v588 = vadd.f32 %v376, %v587
    %v589 = vpop.f32.mrb[0].mxu0
    %590 = vmatprep.mubr.f32.mxu0 0.0
    %591 = vmatmul.mubr.f32.gmra.mrb[0].mxu0 %v445
    %v592 = vpop.f32.mrb[0].mxu0
    %v593 = vadd.f32 %v377, %v592
    %v594 = vpop.f32.mrb[0].mxu0
    %595 = vmatprep.mubr.f32.mxu0 0.0
    %596 = vmatmul.mubr.f32.gmra.mrb[0].mxu0 %v448
    %v597 = vpop.f32.mrb[0].mxu0
    %v598 = vadd.f32 %v378, %v597
    %v599 = vpop.f32.mrb[0].mxu0
    %600 = vdwg.mxu0
    %vm601 = vcmask 130048
    %v602 = vsel %vm601, %v523, -inf
    %603 = vmax.xlane.f32.xlu0 %v602
    %v604 = vpop.xlane.xlu0 %603
    %v605 = vsel %vm601, %v528, -inf
    %606 = vmax.xlane.f32.xlu0 %v605
    %v607 = vpop.xlane.xlu0 %606
    %v608 = vsel %vm601, %v533, -inf
    %609 = vmax.xlane.f32.xlu0 %v608
    %v610 = vpop.xlane.xlu0 %609
    %v611 = vsel %vm601, %v538, -inf
    %612 = vmax.xlane.f32.xlu0 %v611
    %v613 = vpop.xlane.xlu0 %612
    %v614 = vsel %vm601, %v543, -inf
    %615 = vmax.xlane.f32.xlu0 %v614
    %v616 = vpop.xlane.xlu0 %615
    %v617 = vsel %vm601, %v548, -inf
    %618 = vmax.xlane.f32.xlu0 %v617
    %v619 = vpop.xlane.xlu0 %618
    %v620 = vsel %vm601, %v553, -inf
    %621 = vmax.xlane.f32.xlu0 %v620
    %v622 = vpop.xlane.xlu0 %621
    %v623 = vsel %vm601, %v558, -inf
    %624 = vmax.xlane.f32.xlu0 %v623
    %v625 = vpop.xlane.xlu0 %624
    %v626 = vsel %vm601, %v563, -inf
    %627 = vmax.xlane.f32.xlu0 %v626
    %v628 = vpop.xlane.xlu0 %627
    %v629 = vsel %vm601, %v568, -inf
    %630 = vmax.xlane.f32.xlu0 %v629
    %v631 = vpop.xlane.xlu0 %630
    %v632 = vsel %vm601, %v573, -inf
    %633 = vmax.xlane.f32.xlu0 %v632
    %v634 = vpop.xlane.xlu0 %633
    %v635 = vsel %vm601, %v578, -inf
    %636 = vmax.xlane.f32.xlu0 %v635
    %v637 = vpop.xlane.xlu0 %636
    %v638 = vsel %vm601, %v583, -inf
    %639 = vmax.xlane.f32.xlu0 %v638
    %v640 = vpop.xlane.xlu0 %639
    %v641 = vsel %vm601, %v588, -inf
    %642 = vmax.xlane.f32.xlu0 %v641
    %v643 = vpop.xlane.xlu0 %642
    %v644 = vsel %vm601, %v593, -inf
    %645 = vmax.xlane.f32.xlu0 %v644
    %v646 = vpop.xlane.xlu0 %645
    %v647 = vsel %vm601, %v598, -inf
    %648 = vmax.xlane.f32.xlu0 %v647
    %v649 = vpop.xlane.xlu0 %648
    %v650 = vsub.f32 %v523, %v604
    %v651 = vsub.f32 %v528, %v607
    %v652 = vsub.f32 %v533, %v610
    %v653 = vsub.f32 %v538, %v613
    %v654 = vsub.f32 %v543, %v616
    %v655 = vsub.f32 %v548, %v619
    %v656 = vsub.f32 %v553, %v622
    %v657 = vsub.f32 %v558, %v625
    %v658 = vsub.f32 %v563, %v628
    %v659 = vsub.f32 %v568, %v631
    %v660 = vsub.f32 %v573, %v634
    %v661 = vsub.f32 %v578, %v637
    %v662 = vsub.f32 %v583, %v640
    %v663 = vsub.f32 %v588, %v643
    %v664 = vsub.f32 %v593, %v646
    %v665 = vsub.f32 %v598, %v649
    %v666 = vmul.f32 %v650, 1.442695
    %v667 = vpow.pop %v666
    %v668 = vmul.f32 %v651, 1.442695
    %v669 = vpow.pop %v668
    %v670 = vmul.f32 %v652, 1.442695
    %v671 = vpow.pop %v670
    %v672 = vmul.f32 %v653, 1.442695
    %v673 = vpow.pop %v672
    %v674 = vmul.f32 %v654, 1.442695
    %v675 = vpow.pop %v674
    %v676 = vmul.f32 %v655, 1.442695
    %v677 = vpow.pop %v676
    %v678 = vmul.f32 %v656, 1.442695
    %v679 = vpow.pop %v678
    %v680 = vmul.f32 %v657, 1.442695
    %v681 = vpow.pop %v680
    %v682 = vmul.f32 %v658, 1.442695
    %v683 = vpow.pop %v682
    %v684 = vmul.f32 %v659, 1.442695
    %v685 = vpow.pop %v684
    %v686 = vmul.f32 %v660, 1.442695
    %v687 = vpow.pop %v686
    %v688 = vmul.f32 %v661, 1.442695
    %v689 = vpow.pop %v688
    %v690 = vmul.f32 %v662, 1.442695
    %v691 = vpow.pop %v690
    %v692 = vmul.f32 %v663, 1.442695
    %v693 = vpow.pop %v692
    %v694 = vmul.f32 %v664, 1.442695
    %v695 = vpow.pop %v694
    %v696 = vmul.f32 %v665, 1.442695
    %v697 = vpow.pop %v696
    %v698 = vsel %vm601, %v667, 0.0
    %699 = vadd.xlane.f32.xlu0 %v698
    %v700 = vpop.xlane.xlu0 %699
    %v701 = vsel %vm601, %v669, 0.0
    %702 = vadd.xlane.f32.xlu0 %v701
    %v703 = vpop.xlane.xlu0 %702
    %v704 = vsel %vm601, %v671, 0.0
    %705 = vadd.xlane.f32.xlu0 %v704
    %v706 = vpop.xlane.xlu0 %705
    %v707 = vsel %vm601, %v673, 0.0
    %708 = vadd.xlane.f32.xlu0 %v707
    %v709 = vpop.xlane.xlu0 %708
    %v710 = vsel %vm601, %v675, 0.0
    %711 = vadd.xlane.f32.xlu0 %v710
    %v712 = vpop.xlane.xlu0 %711
    %v713 = vsel %vm601, %v677, 0.0
    %714 = vadd.xlane.f32.xlu0 %v713
    %v715 = vpop.xlane.xlu0 %714
    %v716 = vsel %vm601, %v679, 0.0
    %717 = vadd.xlane.f32.xlu0 %v716
    %v718 = vpop.xlane.xlu0 %717
    %v719 = vsel %vm601, %v681, 0.0
    %720 = vadd.xlane.f32.xlu0 %v719
    %v721 = vpop.xlane.xlu0 %720
    %v722 = vsel %vm601, %v683, 0.0
    %723 = vadd.xlane.f32.xlu0 %v722
    %v724 = vpop.xlane.xlu0 %723
    %v725 = vsel %vm601, %v685, 0.0
    %726 = vadd.xlane.f32.xlu0 %v725
    %v727 = vpop.xlane.xlu0 %726
    %v728 = vsel %vm601, %v687, 0.0
    %729 = vadd.xlane.f32.xlu0 %v728
    %v730 = vpop.xlane.xlu0 %729
    %v731 = vsel %vm601, %v689, 0.0
    %732 = vadd.xlane.f32.xlu0 %v731
    %v733 = vpop.xlane.xlu0 %732
    %v734 = vsel %vm601, %v691, 0.0
    %735 = vadd.xlane.f32.xlu0 %v734
    %v736 = vpop.xlane.xlu0 %735
    %v737 = vsel %vm601, %v693, 0.0
    %738 = vadd.xlane.f32.xlu0 %v737
    %v739 = vpop.xlane.xlu0 %738
    %v740 = vsel %vm601, %v695, 0.0
    %741 = vadd.xlane.f32.xlu0 %v740
    %v742 = vpop.xlane.xlu0 %741
    %v743 = vsel %vm601, %v697, 0.0
    %744 = vadd.xlane.f32.xlu0 %v743
    %v745 = vpop.xlane.xlu0 %744
    %v746 = vrcp.pop %v700
    %v747 = vmul.f32 %v667, %v746
    %v748 = vrcp.pop %v703
    %v749 = vmul.f32 %v669, %v748
    %v750 = vrcp.pop %v706
    %v751 = vmul.f32 %v671, %v750
    %v752 = vrcp.pop %v709
    %v753 = vmul.f32 %v673, %v752
    %v754 = vrcp.pop %v712
    %v755 = vmul.f32 %v675, %v754
    %v756 = vrcp.pop %v715
    %v757 = vmul.f32 %v677, %v756
    %v758 = vrcp.pop %v718
    %v759 = vmul.f32 %v679, %v758
    %v760 = vrcp.pop %v721
    %v761 = vmul.f32 %v681, %v760
    %v762 = vrcp.pop %v724
    %v763 = vmul.f32 %v683, %v762
    %v764 = vrcp.pop %v727
    %v765 = vmul.f32 %v685, %v764
    %v766 = vrcp.pop %v730
    %v767 = vmul.f32 %v687, %v766
    %v768 = vrcp.pop %v733
    %v769 = vmul.f32 %v689, %v768
    %v770 = vrcp.pop %v736
    %v771 = vmul.f32 %v691, %v770
    %v772 = vrcp.pop %v739
    %v773 = vmul.f32 %v693, %v772
    %v774 = vrcp.pop %v742
    %v775 = vmul.f32 %v695, %v774
    %v776 = vrcp.pop %v745
    %v777 = vmul.f32 %v697, %v776
    %v779 = vsel %vm601, %v747, 0
    %v782 = vsel %vm601, %v749, 0
    %v785 = vsel %vm601, %v751, 0
    %v788 = vsel %vm601, %v753, 0
    %v791 = vsel %vm601, %v755, 0
    %v794 = vsel %vm601, %v757, 0
    %v797 = vsel %vm601, %v759, 0
    %v800 = vsel %vm601, %v761, 0
    %v803 = vsel %vm601, %v763, 0
    %v806 = vsel %vm601, %v765, 0
    %v809 = vsel %vm601, %v767, 0
    %v812 = vsel %vm601, %v769, 0
    %v815 = vsel %vm601, %v771, 0
    %v818 = vsel %vm601, %v773, 0
    %v821 = vsel %vm601, %v775, 0
    %v824 = vsel %vm601, %v777, 0
    %826 = vmatprep.subr.mxu0 0.0
    %827 = vmatpush1.msra.mxu0 %v329
    %828 = vmatprep.subr.mxu0 0.0
    %829 = vmatpush1.msra.mxu0 %v334
    %830 = vmatprep.subr.mxu0 0.0
    %831 = vmatpush1.msra.mxu0 0.0
    %832 = vmatprep.subr.mxu0 0.0
    %833 = vmatpush1.msra.mxu0 0.0
    %834 = vmatprep.subr.mxu0 0.0
    %835 = vmatpush1.msra.mxu0 0.0
    %836 = vmatprep.subr.mxu0 0.0
    %837 = vmatpush1.msra.mxu0 0.0
    %838 = vmatprep.subr.mxu0 0.0
    %839 = vmatpush1.msra.mxu0 0.0
    %840 = vmatprep.subr.mxu0 0.0
    %841 = vmatpush1.msra.mxu0 0.0
    %842 = vmatprep.subr.mxu0 0.0
    %843 = vmatpush1.msra.mxu0 0.0
    %844 = vmatprep.subr.mxu0 0.0
    %845 = vmatpush1.msra.mxu0 0.0
    %846 = vmatprep.subr.mxu0 0.0
    %847 = vmatpush1.msra.mxu0 0.0
    %848 = vmatprep.subr.mxu0 0.0
    %849 = vmatpush1.msra.mxu0 0.0
    %850 = vmatprep.subr.mxu0 0.0
    %851 = vmatpush1.msra.mxu0 0.0
    %852 = vmatprep.subr.mxu0 0.0
    %853 = vmatpush1.msra.mxu0 0.0
    %854 = vmatprep.subr.mxu0 0.0
    %855 = vmatpush1.msra.mxu0 0.0
    %856 = vmatprep.subr.mxu0 0.0
    %857 = vmatpush1.msra.mxu0 0.0
    %858 = vmatprep.subr.mxu0 0.0
    %859 = vmatpush1.msra.mxu0 0.0
    %860 = vmatprep.subr.mxu0 0.0
    %861 = vmatpush1.msra.mxu0 0.0
    %862 = vmatprep.subr.mxu0 0.0
    %863 = vmatpush1.msra.mxu0 0.0
    %864 = vmatprep.subr.mxu0 0.0
    %865 = vmatpush1.msra.mxu0 0.0
    %866 = vmatprep.subr.mxu0 0.0
    %867 = vmatpush1.msra.mxu0 0.0
    %868 = vmatprep.subr.mxu0 0.0
    %869 = vmatpush1.msra.mxu0 0.0
    %870 = vmatprep.subr.mxu0 0.0
    %871 = vmatpush1.msra.mxu0 0.0
    %872 = vmatprep.subr.mxu0 0.0
    %873 = vmatpush1.msra.mxu0 0.0
    %874 = vmatprep.subr.mxu0 0.0
    %875 = vmatpush1.msra.mxu0 0.0
    %876 = vmatprep.subr.mxu0 0.0
    %877 = vmatpush1.msra.mxu0 0.0
    %878 = vmatprep.subr.mxu0 0.0
    %879 = vmatpush1.msra.mxu0 0.0
    %880 = vmatprep.subr.mxu0 0.0
    %881 = vmatpush1.msra.mxu0 0.0
    %882 = vmatprep.subr.mxu0 0.0
    %883 = vmatpush1.msra.mxu0 0.0
    %884 = vmatprep.subr.mxu0 0.0
    %885 = vmatpush1.msra.mxu0 0.0
    %886 = vmatprep.subr.mxu0 0.0
    %887 = vmatpush1.msra.mxu0 0.0
    %888 = vmatprep.subr.mxu0 0.0
    %889 = vmatpush1.msra.mxu0 0.0
    %890 = vmatprep.mubr.f32.mxu0 0.0
    %891 = vmatmul.mubr.f32.gmra.mrb[0].mxu0 %v779
    %v892 = vpop.f32.mrb[0].mxu0
    %v893 = vadd.f32 0.0, %v892
    %v894 = vpop.f32.mrb[0].mxu0
    %895 = vmatprep.mubr.f32.mxu0 0.0
    %896 = vmatmul.mubr.f32.gmra.mrb[0].mxu0 %v782
    %v897 = vpop.f32.mrb[0].mxu0
    %v898 = vadd.f32 0.0, %v897
    %v899 = vpop.f32.mrb[0].mxu0
    %900 = vmatprep.mubr.f32.mxu0 0.0
    %901 = vmatmul.mubr.f32.gmra.mrb[0].mxu0 %v785
    %v902 = vpop.f32.mrb[0].mxu0
    %v903 = vadd.f32 0.0, %v902
    %v904 = vpop.f32.mrb[0].mxu0
    %905 = vmatprep.mubr.f32.mxu0 0.0
    %906 = vmatmul.mubr.f32.gmra.mrb[0].mxu0 %v788
    %v907 = vpop.f32.mrb[0].mxu0
    %v908 = vadd.f32 0.0, %v907
    %v909 = vpop.f32.mrb[0].mxu0
    %910 = vmatprep.mubr.f32.mxu0 0.0
    %911 = vmatmul.mubr.f32.gmra.mrb[0].mxu0 %v791
    %v912 = vpop.f32.mrb[0].mxu0
    %v913 = vadd.f32 0.0, %v912
    %v914 = vpop.f32.mrb[0].mxu0
    %915 = vmatprep.mubr.f32.mxu0 0.0
    %916 = vmatmul.mubr.f32.gmra.mrb[0].mxu0 %v794
    %v917 = vpop.f32.mrb[0].mxu0
    %v918 = vadd.f32 0.0, %v917
    %v919 = vpop.f32.mrb[0].mxu0
    %920 = vmatprep.mubr.f32.mxu0 0.0
    %921 = vmatmul.mubr.f32.gmra.mrb[0].mxu0 %v797
    %v922 = vpop.f32.mrb[0].mxu0
    %v923 = vadd.f32 0.0, %v922
    %v924 = vpop.f32.mrb[0].mxu0
    %925 = vmatprep.mubr.f32.mxu0 0.0
    %926 = vmatmul.mubr.f32.gmra.mrb[0].mxu0 %v800
    %v927 = vpop.f32.mrb[0].mxu0
    %v928 = vadd.f32 0.0, %v927
    %v929 = vpop.f32.mrb[0].mxu0
    %930 = vmatprep.mubr.f32.mxu0 0.0
    %931 = vmatmul.mubr.f32.gmra.mrb[0].mxu0 %v803
    %v932 = vpop.f32.mrb[0].mxu0
    %v933 = vadd.f32 0.0, %v932
    %v934 = vpop.f32.mrb[0].mxu0
    %935 = vmatprep.mubr.f32.mxu0 0.0
    %936 = vmatmul.mubr.f32.gmra.mrb[0].mxu0 %v806
    %v937 = vpop.f32.mrb[0].mxu0
    %v938 = vadd.f32 0.0, %v937
    %v939 = vpop.f32.mrb[0].mxu0
    %940 = vmatprep.mubr.f32.mxu0 0.0
    %941 = vmatmul.mubr.f32.gmra.mrb[0].mxu0 %v809
    %v942 = vpop.f32.mrb[0].mxu0
    %v943 = vadd.f32 0.0, %v942
    %v944 = vpop.f32.mrb[0].mxu0
    %945 = vmatprep.mubr.f32.mxu0 0.0
    %946 = vmatmul.mubr.f32.gmra.mrb[0].mxu0 %v812
    %v947 = vpop.f32.mrb[0].mxu0
    %v948 = vadd.f32 0.0, %v947
    %v949 = vpop.f32.mrb[0].mxu0
    %950 = vmatprep.mubr.f32.mxu0 0.0
    %951 = vmatmul.mubr.f32.gmra.mrb[0].mxu0 %v815
    %v952 = vpop.f32.mrb[0].mxu0
    %v953 = vadd.f32 0.0, %v952
    %v954 = vpop.f32.mrb[0].mxu0
    %955 = vmatprep.mubr.f32.mxu0 0.0
    %956 = vmatmul.mubr.f32.gmra.mrb[0].mxu0 %v818
    %v957 = vpop.f32.mrb[0].mxu0
    %v958 = vadd.f32 0.0, %v957
    %v959 = vpop.f32.mrb[0].mxu0
    %960 = vmatprep.mubr.f32.mxu0 0.0
    %961 = vmatmul.mubr.f32.gmra.mrb[0].mxu0 %v821
    %v962 = vpop.f32.mrb[0].mxu0
    %v963 = vadd.f32 0.0, %v962
    %v964 = vpop.f32.mrb[0].mxu0
    %965 = vmatprep.mubr.f32.mxu0 0.0
    %966 = vmatmul.mubr.f32.gmra.mrb[0].mxu0 %v824
    %v967 = vpop.f32.mrb[0].mxu0
    %v968 = vadd.f32 0.0, %v967
    %v969 = vpop.f32.mrb[0].mxu0
    %970 = vdwg.mxu0
    %v971 = vmul.f32 %v893, %v347
    %v972 = vmul.f32 %v898, %v348
    %v973 = vmul.f32 %v903, %v349
    %v974 = vmul.f32 %v908, %v350
    %v975 = vmul.f32 %v913, %v351
    %v976 = vmul.f32 %v918, %v352
    %v977 = vmul.f32 %v923, %v353
    %v978 = vmul.f32 %v928, %v354
    %v979 = vmul.f32 %v933, %v355
    %v980 = vmul.f32 %v938, %v356
    %v981 = vmul.f32 %v943, %v357
    %v982 = vmul.f32 %v948, %v358
    %v983 = vmul.f32 %v953, %v359
    %v984 = vmul.f32 %v958, %v360
    %v985 = vmul.f32 %v963, %v361
    %v986 = vmul.f32 %v968, %v362
    %987 = vmatprep.subr.mxu0 0.0
    %988 = vmatpush1.msra.mxu0 %v971
    %989 = vmatprep.subr.mxu0 0.0
    %990 = vmatpush1.msra.mxu0 %v972
    %991 = vmatprep.subr.mxu0 0.0
    %992 = vmatpush1.msra.mxu0 %v973
    %993 = vmatprep.subr.mxu0 0.0
    %994 = vmatpush1.msra.mxu0 %v974
    %995 = vmatprep.subr.mxu0 0.0
    %996 = vmatpush1.msra.mxu0 %v975
    %997 = vmatprep.subr.mxu0 0.0
    %998 = vmatpush1.msra.mxu0 %v976
    %999 = vmatprep.subr.mxu0 0.0
    %1000 = vmatpush1.msra.mxu0 %v977
    %1001 = vmatprep.subr.mxu0 0.0
    %1002 = vmatpush1.msra.mxu0 %v978
    %1003 = vmatprep.subr.mxu0 0.0
    %1004 = vmatpush1.msra.mxu0 %v979
    %1005 = vmatprep.subr.mxu0 0.0
    %1006 = vmatpush1.msra.mxu0 %v980
    %1007 = vmatprep.subr.mxu0 0.0
    %1008 = vmatpush1.msra.mxu0 %v981
    %1009 = vmatprep.subr.mxu0 0.0
    %1010 = vmatpush1.msra.mxu0 %v982
    %1011 = vmatprep.subr.mxu0 0.0
    %1012 = vmatpush1.msra.mxu0 %v983
    %1013 = vmatprep.subr.mxu0 0.0
    %1014 = vmatpush1.msra.mxu0 %v984
    %1015 = vmatprep.subr.mxu0 0.0
    %1016 = vmatpush1.msra.mxu0 %v985
    %1017 = vmatprep.subr.mxu0 0.0
    %1018 = vmatpush1.msra.mxu0 %v986
    %1019 = vmatprep.subr.mxu0 0.0
    %1020 = vmatpush1.msra.mxu0 0.0
    %1021 = vmatprep.subr.mxu0 0.0
    %1022 = vmatpush1.msra.mxu0 0.0
    %1023 = vmatprep.subr.mxu0 0.0
    %1024 = vmatpush1.msra.mxu0 0.0
    %1025 = vmatprep.subr.mxu0 0.0
    %1026 = vmatpush1.msra.mxu0 0.0
    %1027 = vmatprep.subr.mxu0 0.0
    %1028 = vmatpush1.msra.mxu0 0.0
    %1029 = vmatprep.subr.mxu0 0.0
    %1030 = vmatpush1.msra.mxu0 0.0
    %1031 = vmatprep.subr.mxu0 0.0
    %1032 = vmatpush1.msra.mxu0 0.0
    %1033 = vmatprep.subr.mxu0 0.0
    %1034 = vmatpush1.msra.mxu0 0.0
    %1035 = vmatprep.subr.mxu0 0.0
    %1036 = vmatpush1.msra.mxu0 0.0
    %1037 = vmatprep.subr.mxu0 0.0
    %1038 = vmatpush1.msra.mxu0 0.0
    %1039 = vmatprep.subr.mxu0 0.0
    %1040 = vmatpush1.msra.mxu0 0.0
    %1041 = vmatprep.subr.mxu0 0.0
    %1042 = vmatpush1.msra.mxu0 0.0
    %1043 = vmatprep.subr.mxu0 0.0
    %1044 = vmatpush1.msra.mxu0 0.0
    %1045 = vmatprep.subr.mxu0 0.0
    %1046 = vmatpush1.msra.mxu0 0.0
    %1047 = vmatprep.subr.mxu0 0.0
    %1048 = vmatpush1.msra.mxu0 0.0
    %1049 = vmatprep.subr.mxu0 0.0
    %1050 = vmatpush1.msra.mxu0 0.0
    %1051 = vmatprep.mubr.f32.mxu0 0.0
    %1052 = vmatmul.mubr.f32.gmra.mrb[0].mxu0 %v379
    %v1053 = vpop.f32.mrb[0].mxu0
    %v1054 = vadd.f32 0.0, %v1053
    %v1055 = vpop.f32.mrb[0].mxu0
    %1056 = vmatprep.mubr.f32.mxu0 0.0
    %1057 = vmatmul.mubr.f32.gmra.mrb[0].mxu0 %v380
    %v1058 = vpop.f32.mrb[0].mxu0
    %v1059 = vadd.f32 0.0, %v1058
    %v1060 = vpop.f32.mrb[0].mxu0
    %1061 = vdwg.mxu0
    %v1063 = vlaneseq
    %v1064 = vshrl.u32 %v1063, 7
    %v1065 = vsub.s32 0, %v1064
    %v1066 = vrot.slane %v385, %v1065
    %v1069 = vsel %vm57, %v1054, 0
    %v1072 = vsel %vm57, %v1059, 0
    %1074 = vmatprep.subr.mxu0 0.0
    %1075 = vmatpush1.msra.mxu0 %v381
    %1076 = vmatprep.subr.mxu0 0.0
    %1077 = vmatpush1.msra.mxu0 %v382
    %1078 = vmatprep.subr.mxu0 0.0
    %1079 = vmatpush1.msra.mxu0 %v383
    %1080 = vmatprep.subr.mxu0 0.0
    %1081 = vmatpush1.msra.mxu0 %v384
    %1082 = vmatprep.subr.mxu0 0.0
    %1083 = vmatpush1.msra.mxu0 0.0
    %1084 = vmatprep.subr.mxu0 0.0
    %1085 = vmatpush1.msra.mxu0 0.0
    %1086 = vmatprep.subr.mxu0 0.0
    %1087 = vmatpush1.msra.mxu0 0.0
    %1088 = vmatprep.subr.mxu0 0.0
    %1089 = vmatpush1.msra.mxu0 0.0
    %1090 = vmatprep.subr.mxu0 0.0
    %1091 = vmatpush1.msra.mxu0 0.0
    %1092 = vmatprep.subr.mxu0 0.0
    %1093 = vmatpush1.msra.mxu0 0.0
    %1094 = vmatprep.subr.mxu0 0.0
    %1095 = vmatpush1.msra.mxu0 0.0
    %1096 = vmatprep.subr.mxu0 0.0
    %1097 = vmatpush1.msra.mxu0 0.0
    %1098 = vmatprep.subr.mxu0 0.0
    %1099 = vmatpush1.msra.mxu0 0.0
    %1100 = vmatprep.subr.mxu0 0.0
    %1101 = vmatpush1.msra.mxu0 0.0
    %1102 = vmatprep.subr.mxu0 0.0
    %1103 = vmatpush1.msra.mxu0 0.0
    %1104 = vmatprep.subr.mxu0 0.0
    %1105 = vmatpush1.msra.mxu0 0.0
    %1106 = vmatprep.subr.mxu0 0.0
    %1107 = vmatpush1.msra.mxu0 0.0
    %1108 = vmatprep.subr.mxu0 0.0
    %1109 = vmatpush1.msra.mxu0 0.0
    %1110 = vmatprep.subr.mxu0 0.0
    %1111 = vmatpush1.msra.mxu0 0.0
    %1112 = vmatprep.subr.mxu0 0.0
    %1113 = vmatpush1.msra.mxu0 0.0
    %1114 = vmatprep.subr.mxu0 0.0
    %1115 = vmatpush1.msra.mxu0 0.0
    %1116 = vmatprep.subr.mxu0 0.0
    %1117 = vmatpush1.msra.mxu0 0.0
    %1118 = vmatprep.subr.mxu0 0.0
    %1119 = vmatpush1.msra.mxu0 0.0
    %1120 = vmatprep.subr.mxu0 0.0
    %1121 = vmatpush1.msra.mxu0 0.0
    %1122 = vmatprep.subr.mxu0 0.0
    %1123 = vmatpush1.msra.mxu0 0.0
    %1124 = vmatprep.subr.mxu0 0.0
    %1125 = vmatpush1.msra.mxu0 0.0
    %1126 = vmatprep.subr.mxu0 0.0
    %1127 = vmatpush1.msra.mxu0 0.0
    %1128 = vmatprep.subr.mxu0 0.0
    %1129 = vmatpush1.msra.mxu0 0.0
    %1130 = vmatprep.subr.mxu0 0.0
    %1131 = vmatpush1.msra.mxu0 0.0
    %1132 = vmatprep.subr.mxu0 0.0
    %1133 = vmatpush1.msra.mxu0 0.0
    %1134 = vmatprep.subr.mxu0 0.0
    %1135 = vmatpush1.msra.mxu0 0.0
    %1136 = vmatprep.subr.mxu0 0.0
    %1137 = vmatpush1.msra.mxu0 0.0
    %1138 = vmatprep.mubr.f32.mxu0 0.0
    %1139 = vmatmul.mubr.f32.gmra.mrb[0].mxu0 %v1069
    %v1140 = vpop.f32.mrb[0].mxu0
    %v1141 = vadd.f32 %v1066, %v1140
    %v1142 = vpop.f32.mrb[0].mxu0
    %1143 = vmatprep.mubr.f32.mxu0 0.0
    %1144 = vmatmul.mubr.f32.gmra.mrb[0].mxu0 %v1072
    %v1145 = vpop.f32.mrb[0].mxu0
    %v1146 = vadd.f32 %v1066, %v1145
    %v1147 = vpop.f32.mrb[0].mxu0
    %1148 = vdwg.mxu0
    %1149 = vst.msk [vmem:[#allocation2] sm:$0xff] %vm57, %v1141
    %1150 = vst.msk [vmem:[#allocation2 + $0x8] sm:$0xff] %vm57, %v1146
    %v1151 = vmul.f32 %v147, %v347
    %v1152 = vmul.f32 %v152, %v348
    %v1153 = vmul.f32 %v147, %v349
    %v1154 = vmul.f32 %v152, %v350
    %v1155 = vmul.f32 %v147, %v351
    %v1156 = vmul.f32 %v152, %v352
    %v1157 = vmul.f32 %v147, %v353
    %v1158 = vmul.f32 %v152, %v354
    %v1159 = vmul.f32 %v147, %v355
    %v1160 = vmul.f32 %v152, %v356
    %v1161 = vmul.f32 %v147, %v357
    %v1162 = vmul.f32 %v152, %v358
    %v1163 = vmul.f32 %v147, %v359
    %v1164 = vmul.f32 %v152, %v360
    %v1165 = vmul.f32 %v147, %v361
    %v1166 = vmul.f32 %v152, %v362
    %v1168 = vsel %vm57, %v1151, 0
    %v1171 = vsel %vm57, %v1152, 0
    %v1174 = vsel %vm57, %v1153, 0
    %v1177 = vsel %vm57, %v1154, 0
    %v1180 = vsel %vm57, %v1155, 0
    %v1183 = vsel %vm57, %v1156, 0
    %v1186 = vsel %vm57, %v1157, 0
    %v1189 = vsel %vm57, %v1158, 0
    %v1192 = vsel %vm57, %v1159, 0
    %v1195 = vsel %vm57, %v1160, 0
    %v1198 = vsel %vm57, %v1161, 0
    %v1201 = vsel %vm57, %v1162, 0
    %v1204 = vsel %vm57, %v1163, 0
    %v1207 = vsel %vm57, %v1164, 0
    %v1210 = vsel %vm57, %v1165, 0
    %v1213 = vsel %vm57, %v1166, 0
    %v1216 = vsel %vm57, %v243, 0
    %v1219 = vsel %vm57, %v248, 0
    %1221 = vmatprep.subr.mxu0 0.0
    %1222 = vmatpush1.xpose.msra.mxu0 %v1216
    %1223 = vmatprep.subr.mxu0 0.0
    %1224 = vmatpush1.xpose.msra.mxu0 %v1219
    %1225 = vmatprep.subr.mxu0 0.0
    %1226 = vmatpush1.xpose.msra.mxu0 0.0
    %1227 = vmatprep.subr.mxu0 0.0
    %1228 = vmatpush1.xpose.msra.mxu0 0.0
    %1229 = vmatprep.subr.mxu0 0.0
    %1230 = vmatpush1.xpose.msra.mxu0 0.0
    %1231 = vmatprep.subr.mxu0 0.0
    %1232 = vmatpush1.xpose.msra.mxu0 0.0
    %1233 = vmatprep.subr.mxu0 0.0
    %1234 = vmatpush1.xpose.msra.mxu0 0.0
    %1235 = vmatprep.subr.mxu0 0.0
    %1236 = vmatpush1.xpose.msra.mxu0 0.0
    %1237 = vmatprep.subr.mxu0 0.0
    %1238 = vmatpush1.xpose.msra.mxu0 0.0
    %1239 = vmatprep.subr.mxu0 0.0
    %1240 = vmatpush1.xpose.msra.mxu0 0.0
    %1241 = vmatprep.subr.mxu0 0.0
    %1242 = vmatpush1.xpose.msra.mxu0 0.0
    %1243 = vmatprep.subr.mxu0 0.0
    %1244 = vmatpush1.xpose.msra.mxu0 0.0
    %1245 = vmatprep.subr.mxu0 0.0
    %1246 = vmatpush1.xpose.msra.mxu0 0.0
    %1247 = vmatprep.subr.mxu0 0.0
    %1248 = vmatpush1.xpose.msra.mxu0 0.0
    %1249 = vmatprep.subr.mxu0 0.0
    %1250 = vmatpush1.xpose.msra.mxu0 0.0
    %1251 = vmatprep.subr.mxu0 0.0
    %1252 = vmatpush1.xpose.msra.mxu0 0.0
    %1253 = vmatprep.subr.mxu0 0.0
    %1254 = vmatpush1.xpose.msra.mxu0 0.0
    %1255 = vmatprep.subr.mxu0 0.0
    %1256 = vmatpush1.xpose.msra.mxu0 0.0
    %1257 = vmatprep.subr.mxu0 0.0
    %1258 = vmatpush1.xpose.msra.mxu0 0.0
    %1259 = vmatprep.subr.mxu0 0.0
    %1260 = vmatpush1.xpose.msra.mxu0 0.0
    %1261 = vmatprep.subr.mxu0 0.0
    %1262 = vmatpush1.xpose.msra.mxu0 0.0
    %1263 = vmatprep.subr.mxu0 0.0
    %1264 = vmatpush1.xpose.msra.mxu0 0.0
    %1265 = vmatprep.subr.mxu0 0.0
    %1266 = vmatpush1.xpose.msra.mxu0 0.0
    %1267 = vmatprep.subr.mxu0 0.0
    %1268 = vmatpush1.xpose.msra.mxu0 0.0
    %1269 = vmatprep.subr.mxu0 0.0
    %1270 = vmatpush1.xpose.msra.mxu0 0.0
    %1271 = vmatprep.subr.mxu0 0.0
    %1272 = vmatpush1.xpose.msra.mxu0 0.0
    %1273 = vmatprep.subr.mxu0 0.0
    %1274 = vmatpush1.xpose.msra.mxu0 0.0
    %1275 = vmatprep.subr.mxu0 0.0
    %1276 = vmatpush1.xpose.msra.mxu0 0.0
    %1277 = vmatprep.subr.mxu0 0.0
    %1278 = vmatpush1.xpose.msra.mxu0 0.0
    %1279 = vmatprep.subr.mxu0 0.0
    %1280 = vmatpush1.xpose.msra.mxu0 0.0
    %1281 = vmatprep.subr.mxu0 0.0
    %1282 = vmatpush1.xpose.msra.mxu0 0.0
    %1283 = vmatprep.subr.mxu0 0.0
    %1284 = vmatpush1.xpose.msra.mxu0 0.0
    %1285 = vmatprep.mubr.f32.mxu0 0.0
    %1286 = vmatmul.mubr.f32.gmra.mrb[0].mxu0 %v1168
    %v1287 = vpop.f32.mrb[0].mxu0
    %v1288 = vadd.f32 %v363, %v1287
    %v1289 = vpop.f32.mrb[0].mxu0
    %1290 = vmatprep.mubr.f32.mxu0 0.0
    %1291 = vmatmul.mubr.f32.gmra.mrb[0].mxu0 %v1171
    %v1292 = vpop.f32.mrb[0].mxu0
    %v1293 = vadd.f32 %v364, %v1292
    %v1294 = vpop.f32.mrb[0].mxu0
    %1295 = vmatprep.mubr.f32.mxu0 0.0
    %1296 = vmatmul.mubr.f32.gmra.mrb[0].mxu0 %v1174
    %v1297 = vpop.f32.mrb[0].mxu0
    %v1298 = vadd.f32 %v365, %v1297
    %v1299 = vpop.f32.mrb[0].mxu0
    %1300 = vmatprep.mubr.f32.mxu0 0.0
    %1301 = vmatmul.mubr.f32.gmra.mrb[0].mxu0 %v1177
    %v1302 = vpop.f32.mrb[0].mxu0
    %v1303 = vadd.f32 %v366, %v1302
    %v1304 = vpop.f32.mrb[0].mxu0
    %1305 = vmatprep.mubr.f32.mxu0 0.0
    %1306 = vmatmul.mubr.f32.gmra.mrb[0].mxu0 %v1180
    %v1307 = vpop.f32.mrb[0].mxu0
    %v1308 = vadd.f32 %v367, %v1307
    %v1309 = vpop.f32.mrb[0].mxu0
    %1310 = vmatprep.mubr.f32.mxu0 0.0
    %1311 = vmatmul.mubr.f32.gmra.mrb[0].mxu0 %v1183
    %v1312 = vpop.f32.mrb[0].mxu0
    %v1313 = vadd.f32 %v368, %v1312
    %v1314 = vpop.f32.mrb[0].mxu0
    %1315 = vmatprep.mubr.f32.mxu0 0.0
    %1316 = vmatmul.mubr.f32.gmra.mrb[0].mxu0 %v1186
    %v1317 = vpop.f32.mrb[0].mxu0
    %v1318 = vadd.f32 %v369, %v1317
    %v1319 = vpop.f32.mrb[0].mxu0
    %1320 = vmatprep.mubr.f32.mxu0 0.0
    %1321 = vmatmul.mubr.f32.gmra.mrb[0].mxu0 %v1189
    %v1322 = vpop.f32.mrb[0].mxu0
    %v1323 = vadd.f32 %v370, %v1322
    %v1324 = vpop.f32.mrb[0].mxu0
    %1325 = vmatprep.mubr.f32.mxu0 0.0
    %1326 = vmatmul.mubr.f32.gmra.mrb[0].mxu0 %v1192
    %v1327 = vpop.f32.mrb[0].mxu0
    %v1328 = vadd.f32 %v371, %v1327
    %v1329 = vpop.f32.mrb[0].mxu0
    %1330 = vmatprep.mubr.f32.mxu0 0.0
    %1331 = vmatmul.mubr.f32.gmra.mrb[0].mxu0 %v1195
    %v1332 = vpop.f32.mrb[0].mxu0
    %v1333 = vadd.f32 %v372, %v1332
    %v1334 = vpop.f32.mrb[0].mxu0
    %1335 = vmatprep.mubr.f32.mxu0 0.0
    %1336 = vmatmul.mubr.f32.gmra.mrb[0].mxu0 %v1198
    %v1337 = vpop.f32.mrb[0].mxu0
    %v1338 = vadd.f32 %v373, %v1337
    %v1339 = vpop.f32.mrb[0].mxu0
    %1340 = vmatprep.mubr.f32.mxu0 0.0
    %1341 = vmatmul.mubr.f32.gmra.mrb[0].mxu0 %v1201
    %v1342 = vpop.f32.mrb[0].mxu0
    %v1343 = vadd.f32 %v374, %v1342
    %v1344 = vpop.f32.mrb[0].mxu0
    %1345 = vmatprep.mubr.f32.mxu0 0.0
    %1346 = vmatmul.mubr.f32.gmra.mrb[0].mxu0 %v1204
    %v1347 = vpop.f32.mrb[0].mxu0
    %v1348 = vadd.f32 %v375, %v1347
    %v1349 = vpop.f32.mrb[0].mxu0
    %1350 = vmatprep.mubr.f32.mxu0 0.0
    %1351 = vmatmul.mubr.f32.gmra.mrb[0].mxu0 %v1207
    %v1352 = vpop.f32.mrb[0].mxu0
    %v1353 = vadd.f32 %v376, %v1352
    %v1354 = vpop.f32.mrb[0].mxu0
    %1355 = vmatprep.mubr.f32.mxu0 0.0
    %1356 = vmatmul.mubr.f32.gmra.mrb[0].mxu0 %v1210
    %v1357 = vpop.f32.mrb[0].mxu0
    %v1358 = vadd.f32 %v377, %v1357
    %v1359 = vpop.f32.mrb[0].mxu0
    %1360 = vmatprep.mubr.f32.mxu0 0.0
    %1361 = vmatmul.mubr.f32.gmra.mrb[0].mxu0 %v1213
    %v1362 = vpop.f32.mrb[0].mxu0
    %v1363 = vadd.f32 %v378, %v1362
    %v1364 = vpop.f32.mrb[0].mxu0
    %1365 = vdwg.mxu0
    %v1366 = vsel %vm601, %v1288, -inf
    %1367 = vmax.xlane.f32.xlu0 %v1366
    %v1368 = vpop.xlane.xlu0 %1367
    %v1369 = vsel %vm601, %v1293, -inf
    %1370 = vmax.xlane.f32.xlu0 %v1369
    %v1371 = vpop.xlane.xlu0 %1370
    %v1372 = vsel %vm601, %v1298, -inf
    %1373 = vmax.xlane.f32.xlu0 %v1372
    %v1374 = vpop.xlane.xlu0 %1373
    %v1375 = vsel %vm601, %v1303, -inf
    %1376 = vmax.xlane.f32.xlu0 %v1375
    %v1377 = vpop.xlane.xlu0 %1376
    %v1378 = vsel %vm601, %v1308, -inf
    %1379 = vmax.xlane.f32.xlu0 %v1378
    %v1380 = vpop.xlane.xlu0 %1379
    %v1381 = vsel %vm601, %v1313, -inf
    %1382 = vmax.xlane.f32.xlu0 %v1381
    %v1383 = vpop.xlane.xlu0 %1382
    %v1384 = vsel %vm601, %v1318, -inf
    %1385 = vmax.xlane.f32.xlu0 %v1384
    %v1386 = vpop.xlane.xlu0 %1385
    %v1387 = vsel %vm601, %v1323, -inf
    %1388 = vmax.xlane.f32.xlu0 %v1387
    %v1389 = vpop.xlane.xlu0 %1388
    %v1390 = vsel %vm601, %v1328, -inf
    %1391 = vmax.xlane.f32.xlu0 %v1390
    %v1392 = vpop.xlane.xlu0 %1391
    %v1393 = vsel %vm601, %v1333, -inf
    %1394 = vmax.xlane.f32.xlu0 %v1393
    %v1395 = vpop.xlane.xlu0 %1394
    %v1396 = vsel %vm601, %v1338, -inf
    %1397 = vmax.xlane.f32.xlu0 %v1396
    %v1398 = vpop.xlane.xlu0 %1397
    %v1399 = vsel %vm601, %v1343, -inf
    %1400 = vmax.xlane.f32.xlu0 %v1399
    %v1401 = vpop.xlane.xlu0 %1400
    %v1402 = vsel %vm601, %v1348, -inf
    %1403 = vmax.xlane.f32.xlu0 %v1402
    %v1404 = vpop.xlane.xlu0 %1403
    %v1405 = vsel %vm601, %v1353, -inf
    %1406 = vmax.xlane.f32.xlu0 %v1405
    %v1407 = vpop.xlane.xlu0 %1406
    %v1408 = vsel %vm601, %v1358, -inf
    %1409 = vmax.xlane.f32.xlu0 %v1408
    %v1410 = vpop.xlane.xlu0 %1409
    %v1411 = vsel %vm601, %v1363, -inf
    %1412 = vmax.xlane.f32.xlu0 %v1411
    %v1413 = vpop.xlane.xlu0 %1412
    %v1414 = vsub.f32 %v1288, %v1368
    %v1415 = vsub.f32 %v1293, %v1371
    %v1416 = vsub.f32 %v1298, %v1374
    %v1417 = vsub.f32 %v1303, %v1377
    %v1418 = vsub.f32 %v1308, %v1380
    %v1419 = vsub.f32 %v1313, %v1383
    %v1420 = vsub.f32 %v1318, %v1386
    %v1421 = vsub.f32 %v1323, %v1389
    %v1422 = vsub.f32 %v1328, %v1392
    %v1423 = vsub.f32 %v1333, %v1395
    %v1424 = vsub.f32 %v1338, %v1398
    %v1425 = vsub.f32 %v1343, %v1401
    %v1426 = vsub.f32 %v1348, %v1404
    %v1427 = vsub.f32 %v1353, %v1407
    %v1428 = vsub.f32 %v1358, %v1410
    %v1429 = vsub.f32 %v1363, %v1413
    %v1430 = vmul.f32 %v1414, 1.442695
    %v1431 = vpow.pop %v1430
    %v1432 = vmul.f32 %v1415, 1.442695
    %v1433 = vpow.pop %v1432
    %v1434 = vmul.f32 %v1416, 1.442695
    %v1435 = vpow.pop %v1434
    %v1436 = vmul.f32 %v1417, 1.442695
    %v1437 = vpow.pop %v1436
    %v1438 = vmul.f32 %v1418, 1.442695
    %v1439 = vpow.pop %v1438
    %v1440 = vmul.f32 %v1419, 1.442695
    %v1441 = vpow.pop %v1440
    %v1442 = vmul.f32 %v1420, 1.442695
    %v1443 = vpow.pop %v1442
    %v1444 = vmul.f32 %v1421, 1.442695
    %v1445 = vpow.pop %v1444
    %v1446 = vmul.f32 %v1422, 1.442695
    %v1447 = vpow.pop %v1446
    %v1448 = vmul.f32 %v1423, 1.442695
    %v1449 = vpow.pop %v1448
    %v1450 = vmul.f32 %v1424, 1.442695
    %v1451 = vpow.pop %v1450
    %v1452 = vmul.f32 %v1425, 1.442695
    %v1453 = vpow.pop %v1452
    %v1454 = vmul.f32 %v1426, 1.442695
    %v1455 = vpow.pop %v1454
    %v1456 = vmul.f32 %v1427, 1.442695
    %v1457 = vpow.pop %v1456
    %v1458 = vmul.f32 %v1428, 1.442695
    %v1459 = vpow.pop %v1458
    %v1460 = vmul.f32 %v1429, 1.442695
    %v1461 = vpow.pop %v1460
    %v1462 = vsel %vm601, %v1431, 0.0
    %1463 = vadd.xlane.f32.xlu0 %v1462
    %v1464 = vpop.xlane.xlu0 %1463
    %v1465 = vsel %vm601, %v1433, 0.0
    %1466 = vadd.xlane.f32.xlu0 %v1465
    %v1467 = vpop.xlane.xlu0 %1466
    %v1468 = vsel %vm601, %v1435, 0.0
    %1469 = vadd.xlane.f32.xlu0 %v1468
    %v1470 = vpop.xlane.xlu0 %1469
    %v1471 = vsel %vm601, %v1437, 0.0
    %1472 = vadd.xlane.f32.xlu0 %v1471
    %v1473 = vpop.xlane.xlu0 %1472
    %v1474 = vsel %vm601, %v1439, 0.0
    %1475 = vadd.xlane.f32.xlu0 %v1474
    %v1476 = vpop.xlane.xlu0 %1475
    %v1477 = vsel %vm601, %v1441, 0.0
    %1478 = vadd.xlane.f32.xlu0 %v1477
    %v1479 = vpop.xlane.xlu0 %1478
    %v1480 = vsel %vm601, %v1443, 0.0
    %1481 = vadd.xlane.f32.xlu0 %v1480
    %v1482 = vpop.xlane.xlu0 %1481
    %v1483 = vsel %vm601, %v1445, 0.0
    %1484 = vadd.xlane.f32.xlu0 %v1483
    %v1485 = vpop.xlane.xlu0 %1484
    %v1486 = vsel %vm601, %v1447, 0.0
    %1487 = vadd.xlane.f32.xlu0 %v1486
    %v1488 = vpop.xlane.xlu0 %1487
    %v1489 = vsel %vm601, %v1449, 0.0
    %1490 = vadd.xlane.f32.xlu0 %v1489
    %v1491 = vpop.xlane.xlu0 %1490
    %v1492 = vsel %vm601, %v1451, 0.0
    %1493 = vadd.xlane.f32.xlu0 %v1492
    %v1494 = vpop.xlane.xlu0 %1493
    %v1495 = vsel %vm601, %v1453, 0.0
    %1496 = vadd.xlane.f32.xlu0 %v1495
    %v1497 = vpop.xlane.xlu0 %1496
    %v1498 = vsel %vm601, %v1455, 0.0
    %1499 = vadd.xlane.f32.xlu0 %v1498
    %v1500 = vpop.xlane.xlu0 %1499
    %v1501 = vsel %vm601, %v1457, 0.0
    %1502 = vadd.xlane.f32.xlu0 %v1501
    %v1503 = vpop.xlane.xlu0 %1502
    %v1504 = vsel %vm601, %v1459, 0.0
    %1505 = vadd.xlane.f32.xlu0 %v1504
    %v1506 = vpop.xlane.xlu0 %1505
    %v1507 = vsel %vm601, %v1461, 0.0
    %1508 = vadd.xlane.f32.xlu0 %v1507
    %v1509 = vpop.xlane.xlu0 %1508
    %v1510 = vrcp.pop %v1464
    %v1511 = vmul.f32 %v1431, %v1510
    %v1512 = vrcp.pop %v1467
    %v1513 = vmul.f32 %v1433, %v1512
    %v1514 = vrcp.pop %v1470
    %v1515 = vmul.f32 %v1435, %v1514
    %v1516 = vrcp.pop %v1473
    %v1517 = vmul.f32 %v1437, %v1516
    %v1518 = vrcp.pop %v1476
    %v1519 = vmul.f32 %v1439, %v1518
    %v1520 = vrcp.pop %v1479
    %v1521 = vmul.f32 %v1441, %v1520
    %v1522 = vrcp.pop %v1482
    %v1523 = vmul.f32 %v1443, %v1522
    %v1524 = vrcp.pop %v1485
    %v1525 = vmul.f32 %v1445, %v1524
    %v1526 = vrcp.pop %v1488
    %v1527 = vmul.f32 %v1447, %v1526
    %v1528 = vrcp.pop %v1491
    %v1529 = vmul.f32 %v1449, %v1528
    %v1530 = vrcp.pop %v1494
    %v1531 = vmul.f32 %v1451, %v1530
    %v1532 = vrcp.pop %v1497
    %v1533 = vmul.f32 %v1453, %v1532
    %v1534 = vrcp.pop %v1500
    %v1535 = vmul.f32 %v1455, %v1534
    %v1536 = vrcp.pop %v1503
    %v1537 = vmul.f32 %v1457, %v1536
    %v1538 = vrcp.pop %v1506
    %v1539 = vmul.f32 %v1459, %v1538
    %v1540 = vrcp.pop %v1509
    %v1541 = vmul.f32 %v1461, %v1540
    %v1543 = vsel %vm601, %v1511, 0
    %v1546 = vsel %vm601, %v1513, 0
    %v1549 = vsel %vm601, %v1515, 0
    %v1552 = vsel %vm601, %v1517, 0
    %v1555 = vsel %vm601, %v1519, 0
    %v1558 = vsel %vm601, %v1521, 0
    %v1561 = vsel %vm601, %v1523, 0
    %v1564 = vsel %vm601, %v1525, 0
    %v1567 = vsel %vm601, %v1527, 0
    %v1570 = vsel %vm601, %v1529, 0
    %v1573 = vsel %vm601, %v1531, 0
    %v1576 = vsel %vm601, %v1533, 0
    %v1579 = vsel %vm601, %v1535, 0
    %v1582 = vsel %vm601, %v1537, 0
    %v1585 = vsel %vm601, %v1539, 0
    %v1588 = vsel %vm601, %v1541, 0
    %1590 = vmatprep.subr.mxu0 0.0
    %1591 = vmatpush1.msra.mxu0 %v339
    %1592 = vmatprep.subr.mxu0 0.0
    %1593 = vmatpush1.msra.mxu0 %v344
    %1594 = vmatprep.subr.mxu0 0.0
    %1595 = vmatpush1.msra.mxu0 0.0
    %1596 = vmatprep.subr.mxu0 0.0
    %1597 = vmatpush1.msra.mxu0 0.0
    %1598 = vmatprep.subr.mxu0 0.0
    %1599 = vmatpush1.msra.mxu0 0.0
    %1600 = vmatprep.subr.mxu0 0.0
    %1601 = vmatpush1.msra.mxu0 0.0
    %1602 = vmatprep.subr.mxu0 0.0
    %1603 = vmatpush1.msra.mxu0 0.0
    %1604 = vmatprep.subr.mxu0 0.0
    %1605 = vmatpush1.msra.mxu0 0.0
    %1606 = vmatprep.subr.mxu0 0.0
    %1607 = vmatpush1.msra.mxu0 0.0
    %1608 = vmatprep.subr.mxu0 0.0
    %1609 = vmatpush1.msra.mxu0 0.0
    %1610 = vmatprep.subr.mxu0 0.0
    %1611 = vmatpush1.msra.mxu0 0.0
    %1612 = vmatprep.subr.mxu0 0.0
    %1613 = vmatpush1.msra.mxu0 0.0
    %1614 = vmatprep.subr.mxu0 0.0
    %1615 = vmatpush1.msra.mxu0 0.0
    %1616 = vmatprep.subr.mxu0 0.0
    %1617 = vmatpush1.msra.mxu0 0.0
    %1618 = vmatprep.subr.mxu0 0.0
    %1619 = vmatpush1.msra.mxu0 0.0
    %1620 = vmatprep.subr.mxu0 0.0
    %1621 = vmatpush1.msra.mxu0 0.0
    %1622 = vmatprep.subr.mxu0 0.0
    %1623 = vmatpush1.msra.mxu0 0.0
    %1624 = vmatprep.subr.mxu0 0.0
    %1625 = vmatpush1.msra.mxu0 0.0
    %1626 = vmatprep.subr.mxu0 0.0
    %1627 = vmatpush1.msra.mxu0 0.0
    %1628 = vmatprep.subr.mxu0 0.0
    %1629 = vmatpush1.msra.mxu0 0.0
    %1630 = vmatprep.subr.mxu0 0.0
    %1631 = vmatpush1.msra.mxu0 0.0
    %1632 = vmatprep.subr.mxu0 0.0
    %1633 = vmatpush1.msra.mxu0 0.0
    %1634 = vmatprep.subr.mxu0 0.0
    %1635 = vmatpush1.msra.mxu0 0.0
    %1636 = vmatprep.subr.mxu0 0.0
    %1637 = vmatpush1.msra.mxu0 0.0
    %1638 = vmatprep.subr.mxu0 0.0
    %1639 = vmatpush1.msra.mxu0 0.0
    %1640 = vmatprep.subr.mxu0 0.0
    %1641 = vmatpush1.msra.mxu0 0.0
    %1642 = vmatprep.subr.mxu0 0.0
    %1643 = vmatpush1.msra.mxu0 0.0
    %1644 = vmatprep.subr.mxu0 0.0
    %1645 = vmatpush1.msra.mxu0 0.0
    %1646 = vmatprep.subr.mxu0 0.0
    %1647 = vmatpush1.msra.mxu0 0.0
    %1648 = vmatprep.subr.mxu0 0.0
    %1649 = vmatpush1.msra.mxu0 0.0
    %1650 = vmatprep.subr.mxu0 0.0
    %1651 = vmatpush1.msra.mxu0 0.0
    %1652 = vmatprep.subr.mxu0 0.0
    %1653 = vmatpush1.msra.mxu0 0.0
    %1654 = vmatprep.mubr.f32.mxu0 0.0
    %1655 = vmatmul.mubr.f32.gmra.mrb[0].mxu0 %v1543
    %v1656 = vpop.f32.mrb[0].mxu0
    %v1657 = vadd.f32 0.0, %v1656
    %v1658 = vpop.f32.mrb[0].mxu0
    %1659 = vmatprep.mubr.f32.mxu0 0.0
    %1660 = vmatmul.mubr.f32.gmra.mrb[0].mxu0 %v1546
    %v1661 = vpop.f32.mrb[0].mxu0
    %v1662 = vadd.f32 0.0, %v1661
    %v1663 = vpop.f32.mrb[0].mxu0
    %1664 = vmatprep.mubr.f32.mxu0 0.0
    %1665 = vmatmul.mubr.f32.gmra.mrb[0].mxu0 %v1549
    %v1666 = vpop.f32.mrb[0].mxu0
    %v1667 = vadd.f32 0.0, %v1666
    %v1668 = vpop.f32.mrb[0].mxu0
    %1669 = vmatprep.mubr.f32.mxu0 0.0
    %1670 = vmatmul.mubr.f32.gmra.mrb[0].mxu0 %v1552
    %v1671 = vpop.f32.mrb[0].mxu0
    %v1672 = vadd.f32 0.0, %v1671
    %v1673 = vpop.f32.mrb[0].mxu0
    %1674 = vmatprep.mubr.f32.mxu0 0.0
    %1675 = vmatmul.mubr.f32.gmra.mrb[0].mxu0 %v1555
    %v1676 = vpop.f32.mrb[0].mxu0
    %v1677 = vadd.f32 0.0, %v1676
    %v1678 = vpop.f32.mrb[0].mxu0
    %1679 = vmatprep.mubr.f32.mxu0 0.0
    %1680 = vmatmul.mubr.f32.gmra.mrb[0].mxu0 %v1558
    %v1681 = vpop.f32.mrb[0].mxu0
    %v1682 = vadd.f32 0.0, %v1681
    %v1683 = vpop.f32.mrb[0].mxu0
    %1684 = vmatprep.mubr.f32.mxu0 0.0
    %1685 = vmatmul.mubr.f32.gmra.mrb[0].mxu0 %v1561
    %v1686 = vpop.f32.mrb[0].mxu0
    %v1687 = vadd.f32 0.0, %v1686
    %v1688 = vpop.f32.mrb[0].mxu0
    %1689 = vmatprep.mubr.f32.mxu0 0.0
    %1690 = vmatmul.mubr.f32.gmra.mrb[0].mxu0 %v1564
    %v1691 = vpop.f32.mrb[0].mxu0
    %v1692 = vadd.f32 0.0, %v1691
    %v1693 = vpop.f32.mrb[0].mxu0
    %1694 = vmatprep.mubr.f32.mxu0 0.0
    %1695 = vmatmul.mubr.f32.gmra.mrb[0].mxu0 %v1567
    %v1696 = vpop.f32.mrb[0].mxu0
    %v1697 = vadd.f32 0.0, %v1696
    %v1698 = vpop.f32.mrb[0].mxu0
    %1699 = vmatprep.mubr.f32.mxu0 0.0
    %1700 = vmatmul.mubr.f32.gmra.mrb[0].mxu0 %v1570
    %v1701 = vpop.f32.mrb[0].mxu0
    %v1702 = vadd.f32 0.0, %v1701
    %v1703 = vpop.f32.mrb[0].mxu0
    %1704 = vmatprep.mubr.f32.mxu0 0.0
    %1705 = vmatmul.mubr.f32.gmra.mrb[0].mxu0 %v1573
    %v1706 = vpop.f32.mrb[0].mxu0
    %v1707 = vadd.f32 0.0, %v1706
    %v1708 = vpop.f32.mrb[0].mxu0
    %1709 = vmatprep.mubr.f32.mxu0 0.0
    %1710 = vmatmul.mubr.f32.gmra.mrb[0].mxu0 %v1576
    %v1711 = vpop.f32.mrb[0].mxu0
    %v1712 = vadd.f32 0.0, %v1711
    %v1713 = vpop.f32.mrb[0].mxu0
    %1714 = vmatprep.mubr.f32.mxu0 0.0
    %1715 = vmatmul.mubr.f32.gmra.mrb[0].mxu0 %v1579
    %v1716 = vpop.f32.mrb[0].mxu0
    %v1717 = vadd.f32 0.0, %v1716
    %v1718 = vpop.f32.mrb[0].mxu0
    %1719 = vmatprep.mubr.f32.mxu0 0.0
    %1720 = vmatmul.mubr.f32.gmra.mrb[0].mxu0 %v1582
    %v1721 = vpop.f32.mrb[0].mxu0
    %v1722 = vadd.f32 0.0, %v1721
    %v1723 = vpop.f32.mrb[0].mxu0
    %1724 = vmatprep.mubr.f32.mxu0 0.0
    %1725 = vmatmul.mubr.f32.gmra.mrb[0].mxu0 %v1585
    %v1726 = vpop.f32.mrb[0].mxu0
    %v1727 = vadd.f32 0.0, %v1726
    %v1728 = vpop.f32.mrb[0].mxu0
    %1729 = vmatprep.mubr.f32.mxu0 0.0
    %1730 = vmatmul.mubr.f32.gmra.mrb[0].mxu0 %v1588
    %v1731 = vpop.f32.mrb[0].mxu0
    %v1732 = vadd.f32 0.0, %v1731
    %v1733 = vpop.f32.mrb[0].mxu0
    %1734 = vdwg.mxu0
    %v1735 = vmul.f32 %v1657, %v347
    %v1736 = vmul.f32 %v1662, %v348
    %v1737 = vmul.f32 %v1667, %v349
    %v1738 = vmul.f32 %v1672, %v350
    %v1739 = vmul.f32 %v1677, %v351
    %v1740 = vmul.f32 %v1682, %v352
    %v1741 = vmul.f32 %v1687, %v353
    %v1742 = vmul.f32 %v1692, %v354
    %v1743 = vmul.f32 %v1697, %v355
    %v1744 = vmul.f32 %v1702, %v356
    %v1745 = vmul.f32 %v1707, %v357
    %v1746 = vmul.f32 %v1712, %v358
    %v1747 = vmul.f32 %v1717, %v359
    %v1748 = vmul.f32 %v1722, %v360
    %v1749 = vmul.f32 %v1727, %v361
    %v1750 = vmul.f32 %v1732, %v362
    %1751 = vmatprep.subr.mxu0 0.0
    %1752 = vmatpush1.msra.mxu0 %v1735
    %1753 = vmatprep.subr.mxu0 0.0
    %1754 = vmatpush1.msra.mxu0 %v1736
    %1755 = vmatprep.subr.mxu0 0.0
    %1756 = vmatpush1.msra.mxu0 %v1737
    %1757 = vmatprep.subr.mxu0 0.0
    %1758 = vmatpush1.msra.mxu0 %v1738
    %1759 = vmatprep.subr.mxu0 0.0
    %1760 = vmatpush1.msra.mxu0 %v1739
    %1761 = vmatprep.subr.mxu0 0.0
    %1762 = vmatpush1.msra.mxu0 %v1740
    %1763 = vmatprep.subr.mxu0 0.0
    %1764 = vmatpush1.msra.mxu0 %v1741
    %1765 = vmatprep.subr.mxu0 0.0
    %1766 = vmatpush1.msra.mxu0 %v1742
    %1767 = vmatprep.subr.mxu0 0.0
    %1768 = vmatpush1.msra.mxu0 %v1743
    %1769 = vmatprep.subr.mxu0 0.0
    %1770 = vmatpush1.msra.mxu0 %v1744
    %1771 = vmatprep.subr.mxu0 0.0
    %1772 = vmatpush1.msra.mxu0 %v1745
    %1773 = vmatprep.subr.mxu0 0.0
    %1774 = vmatpush1.msra.mxu0 %v1746
    %1775 = vmatprep.subr.mxu0 0.0
    %1776 = vmatpush1.msra.mxu0 %v1747
    %1777 = vmatprep.subr.mxu0 0.0
    %1778 = vmatpush1.msra.mxu0 %v1748
    %1779 = vmatprep.subr.mxu0 0.0
    %1780 = vmatpush1.msra.mxu0 %v1749
    %1781 = vmatprep.subr.mxu0 0.0
    %1782 = vmatpush1.msra.mxu0 %v1750
    %1783 = vmatprep.subr.mxu0 0.0
    %1784 = vmatpush1.msra.mxu0 0.0
    %1785 = vmatprep.subr.mxu0 0.0
    %1786 = vmatpush1.msra.mxu0 0.0
    %1787 = vmatprep.subr.mxu0 0.0
    %1788 = vmatpush1.msra.mxu0 0.0
    %1789 = vmatprep.subr.mxu0 0.0
    %1790 = vmatpush1.msra.mxu0 0.0
    %1791 = vmatprep.subr.mxu0 0.0
    %1792 = vmatpush1.msra.mxu0 0.0
    %1793 = vmatprep.subr.mxu0 0.0
    %1794 = vmatpush1.msra.mxu0 0.0
    %1795 = vmatprep.subr.mxu0 0.0
    %1796 = vmatpush1.msra.mxu0 0.0
    %1797 = vmatprep.subr.mxu0 0.0
    %1798 = vmatpush1.msra.mxu0 0.0
    %1799 = vmatprep.subr.mxu0 0.0
    %1800 = vmatpush1.msra.mxu0 0.0
    %1801 = vmatprep.subr.mxu0 0.0
    %1802 = vmatpush1.msra.mxu0 0.0
    %1803 = vmatprep.subr.mxu0 0.0
    %1804 = vmatpush1.msra.mxu0 0.0
    %1805 = vmatprep.subr.mxu0 0.0
    %1806 = vmatpush1.msra.mxu0 0.0
    %1807 = vmatprep.subr.mxu0 0.0
    %1808 = vmatpush1.msra.mxu0 0.0
    %1809 = vmatprep.subr.mxu0 0.0
    %1810 = vmatpush1.msra.mxu0 0.0
    %1811 = vmatprep.subr.mxu0 0.0
    %1812 = vmatpush1.msra.mxu0 0.0
    %1813 = vmatprep.subr.mxu0 0.0
    %1814 = vmatpush1.msra.mxu0 0.0
    %1815 = vmatprep.mubr.f32.mxu0 0.0
    %1816 = vmatmul.mubr.f32.gmra.mrb[0].mxu0 %v379
    %v1817 = vpop.f32.mrb[0].mxu0
    %v1818 = vadd.f32 0.0, %v1817
    %v1819 = vpop.f32.mrb[0].mxu0
    %1820 = vmatprep.mubr.f32.mxu0 0.0
    %1821 = vmatmul.mubr.f32.gmra.mrb[0].mxu0 %v380
    %v1822 = vpop.f32.mrb[0].mxu0
    %v1823 = vadd.f32 0.0, %v1822
    %v1824 = vpop.f32.mrb[0].mxu0
    %1825 = vdwg.mxu0
    %v1827 = vsel %vm57, %v1818, 0
    %v1830 = vsel %vm57, %v1823, 0
    %1832 = vmatprep.subr.mxu0 0.0
    %1833 = vmatpush1.msra.mxu0 %v381
    %1834 = vmatprep.subr.mxu0 0.0
    %1835 = vmatpush1.msra.mxu0 %v382
    %1836 = vmatprep.subr.mxu0 0.0
    %1837 = vmatpush1.msra.mxu0 %v383
    %1838 = vmatprep.subr.mxu0 0.0
    %1839 = vmatpush1.msra.mxu0 %v384
    %1840 = vmatprep.subr.mxu0 0.0
    %1841 = vmatpush1.msra.mxu0 0.0
    %1842 = vmatprep.subr.mxu0 0.0
    %1843 = vmatpush1.msra.mxu0 0.0
    %1844 = vmatprep.subr.mxu0 0.0
    %1845 = vmatpush1.msra.mxu0 0.0
    %1846 = vmatprep.subr.mxu0 0.0
    %1847 = vmatpush1.msra.mxu0 0.0
    %1848 = vmatprep.subr.mxu0 0.0
    %1849 = vmatpush1.msra.mxu0 0.0
    %1850 = vmatprep.subr.mxu0 0.0
    %1851 = vmatpush1.msra.mxu0 0.0
    %1852 = vmatprep.subr.mxu0 0.0
    %1853 = vmatpush1.msra.mxu0 0.0
    %1854 = vmatprep.subr.mxu0 0.0
    %1855 = vmatpush1.msra.mxu0 0.0
    %1856 = vmatprep.subr.mxu0 0.0
    %1857 = vmatpush1.msra.mxu0 0.0
    %1858 = vmatprep.subr.mxu0 0.0
    %1859 = vmatpush1.msra.mxu0 0.0
    %1860 = vmatprep.subr.mxu0 0.0
    %1861 = vmatpush1.msra.mxu0 0.0
    %1862 = vmatprep.subr.mxu0 0.0
    %1863 = vmatpush1.msra.mxu0 0.0
    %1864 = vmatprep.subr.mxu0 0.0
    %1865 = vmatpush1.msra.mxu0 0.0
    %1866 = vmatprep.subr.mxu0 0.0
    %1867 = vmatpush1.msra.mxu0 0.0
    %1868 = vmatprep.subr.mxu0 0.0
    %1869 = vmatpush1.msra.mxu0 0.0
    %1870 = vmatprep.subr.mxu0 0.0
    %1871 = vmatpush1.msra.mxu0 0.0
    %1872 = vmatprep.subr.mxu0 0.0
    %1873 = vmatpush1.msra.mxu0 0.0
    %1874 = vmatprep.subr.mxu0 0.0
    %1875 = vmatpush1.msra.mxu0 0.0
    %1876 = vmatprep.subr.mxu0 0.0
    %1877 = vmatpush1.msra.mxu0 0.0
    %1878 = vmatprep.subr.mxu0 0.0
    %1879 = vmatpush1.msra.mxu0 0.0
    %1880 = vmatprep.subr.mxu0 0.0
    %1881 = vmatpush1.msra.mxu0 0.0
    %1882 = vmatprep.subr.mxu0 0.0
    %1883 = vmatpush1.msra.mxu0 0.0
    %1884 = vmatprep.subr.mxu0 0.0
    %1885 = vmatpush1.msra.mxu0 0.0
    %1886 = vmatprep.subr.mxu0 0.0
    %1887 = vmatpush1.msra.mxu0 0.0
    %1888 = vmatprep.subr.mxu0 0.0
    %1889 = vmatpush1.msra.mxu0 0.0
    %1890 = vmatprep.subr.mxu0 0.0
    %1891 = vmatpush1.msra.mxu0 0.0
    %1892 = vmatprep.subr.mxu0 0.0
    %1893 = vmatpush1.msra.mxu0 0.0
    %1894 = vmatprep.subr.mxu0 0.0
    %1895 = vmatpush1.msra.mxu0 0.0
    %1896 = vmatprep.mubr.f32.mxu0 0.0
    %1897 = vmatmul.mubr.f32.gmra.mrb[0].mxu0 %v1827
    %v1898 = vpop.f32.mrb[0].mxu0
    %v1899 = vadd.f32 %v1066, %v1898
    %v1900 = vpop.f32.mrb[0].mxu0
    %1901 = vmatprep.mubr.f32.mxu0 0.0
    %1902 = vmatmul.mubr.f32.gmra.mrb[0].mxu0 %v1830
    %v1903 = vpop.f32.mrb[0].mxu0
    %v1904 = vadd.f32 %v1066, %v1903
    %v1905 = vpop.f32.mrb[0].mxu0
    %1906 = vdwg.mxu0
    %1907 = vst.msk [vmem:[#allocation2 + $0x10] sm:$0xff] %vm57, %v1899
    %1908 = vst.msk [vmem:[#allocation2 + $0x18] sm:$0xff] %vm57, %v1904
    // Predicated region
    $region50: #{adaptive_graph_attention.1} parent=1 // pred_check
      _
    $region51: #{adaptive_graph_attention.1} parent=1 // pred_check_branch
      %1910 = sbr.rel (0) target = $region53
    $region52: #{adaptive_graph_attention.1} parent=1 // pred_region
      %s1912 = ssub.s32 512, 512
      %1913 = vsyncadd [#allocation3], %s1912
      %s1914 = sshll.u32 [#allocation2], 4
      %s1915 = int_to_ptr.vmem [resolvable:$true] %s1914
      %1920 = dma.vmem_to_hbm [thread:$0]  %s1915, 512, %s12, [#allocation3], 128, 128, 8
    $region53: #{adaptive_graph_attention.1} parent=1 // pred_fallthru
      _
    // Predicated region
    $region54: #{adaptive_graph_attention.1} parent=1 // pred_check
      _
    $region55: #{adaptive_graph_attention.1} parent=1 // pred_check_branch
      %1922 = sbr.rel (0) target = $region57
    $region56: #{adaptive_graph_attention.1} parent=1 // pred_region
      %1923 = dma.done [#allocation3], 512
    $region57: #{adaptive_graph_attention.1} parent=1 // pred_fallthru
      _
    %1924 = vsyncpa [#allocation3], 1

</llo_original>
